<compile_context>
chip_gen: v7x
topology: tpu7x:2x2x1
jax: 0.10.0
libtpu: 0.0.40
codegen_flags: <defaults>
</compile_context>

<pallas_src>
import numpy as np
import jax
import jax.numpy as jnp
from jax import lax
from jax.experimental import pallas as pl
from jax.experimental.pallas import tpu as pltpu

# HP_FILTERS is not defined in the provided snippet; use a deterministic set of
# standard 3x3 SRM high-pass filters (each (3,3) -> stacked to (K,1,3,3)).
HP_FILTERS = [
    np.array([[0., 0., 0.], [1., -2., 1.], [0., 0., 0.]], np.float32) / 2.0,
    np.array([[1., -2., 1.], [-2., 4., -2.], [1., -2., 1.]], np.float32) / 4.0,
    np.array([[0., 1., 0.], [1., -4., 1.], [0., 1., 0.]], np.float32) / 4.0,
]
K = len(HP_FILTERS)


def _analyze_hp_bank(hp_np, Kf):
    """Trace-time split of the fixed high-pass bank:
    rank-1 filters -> (col, row) 1-D pair; others -> sparse 2-D (zero taps skipped)."""
    sep, dense = {}, {}
    for k in range(Kf):
        ker = np.asarray(hp_np[k, 0], np.float64)
        nnz = int(np.count_nonzero(ker))
        if nnz == 0:
            continue
        u, s, vh = np.linalg.svd(ker)
        if s[0] > 0.0 and s[1] <= 1e-6 * s[0]:
            colv = (u[:, 0] * s[0]).copy()
            rowv = vh[0].copy()
            colv[np.abs(colv) < 1e-9 * np.abs(colv).max()] = 0.0
            rowv[np.abs(rowv) < 1e-9 * np.abs(rowv).max()] = 0.0
            if np.count_nonzero(colv) + np.count_nonzero(rowv) < nnz:
                sep[k] = (colv, rowv)
                continue
        dense[k] = ker
    return sep, dense


def _make_kernel(C, H, W, Kf, bt, Lp, Lout, hp_np):
    """One grid step processes bt batch elements x {rich, poor}: lanes are packed
    branch-major as (branch, b, col) -> rich slab [0, bt*W), poor slab [bt*W, 2*bt*W)."""
    rich_w = bt * W
    inv_c = 1.0 / float(C)

    sep, dense = _analyze_hp_bank(hp_np, Kf)
    # dense taps grouped by (dy, dx) so row/col shifts are shared across filters
    taps = {}
    for k, ker in dense.items():
        for dy in range(3):
            for dx in range(3):
                w = float(ker[dy, dx])
                if w != 0.0:
                    taps.setdefault((dy, dx), []).append((k, w))

    def kernel(cw_ref, sc_ref, sh_ref, x_ref, out_ref):
        # cw_ref : SMEM (Kf*Kf*9,) flattened learned conv weight
        # sc/sh  : SMEM (Kf,)      folded BatchNorm scale / shift
        # x_ref  : VMEM (1, C, H, Lp)  packed inputs for this batch tile
        # out_ref: VMEM (1, Kf, H, Lout) rich-poor slab only
        f32 = jnp.float32

        # --- SAME-padding boundary masks, generated on-chip (no mask DMA).
        lane = lax.broadcasted_iota(jnp.int32, (1, Lp), 1)
        colid = lane % W                                   # column within each element
        cm_l = (colid != 0).astype(f32)                    # valid when reading col-1
        cm_r = (colid != W - 1).astype(f32)                # valid when reading col+1
        rowid = lax.broadcasted_iota(jnp.int32, (H, Lp), 0)
        rm_u = (rowid != 0).astype(f32)                    # valid when reading row-1
        rm_d = (rowid != H - 1).astype(f32)                # valid when reading row+1

        def shift_rows(a, sy):
            # b[r, l] = a[r+sy, l] if 0 <= r+sy < H else 0   (wrap lands on masked rows)
            if sy == 0:
                return a
            a = pltpu.roll(a, shift=(-sy) % H, axis=0)
            return a * (rm_u if sy < 0 else rm_d)

        def shift_cols(a, sx):
            # b[r, l] = a[r, l+sx] if l+sx stays inside the same element slot else 0
            if sx == 0:
                return a
            a = pltpu.roll(a, shift=(-sx) % Lp, axis=1)
            return a * (cm_l if sx < 0 else cm_r)

        def acc(dst, val):
            return val if dst is None else dst + val

        # --- channel mean (accumulate channel-by-channel: low vreg pressure)
        m = x_ref[0, 0]
        for c in range(1, C):
            m = m + x_ref[0, c]
        m = m * inv_c

        # --- fixed high-pass bank: baked constants, zero taps skipped,
        #     rank-1 filters as two 1-D passes (row shifts shared across filters).
        f = [None] * Kf
        for dy in range(3):
            if not any((dy, dx) in taps for dx in range(3)):
                continue
            rowed = shift_rows(m, dy - 1)
            for dx in range(3):
                if (dy, dx) not in taps:
                    continue
                t = shift_cols(rowed, dx - 1)
                for k, w in taps[(dy, dx)]:
                    f[k] = acc(f[k], w * t)
        for k, (colv, rowv) in sep.items():
            t = None
            for dx in range(3):
                w = float(rowv[dx])
                if w != 0.0:
                    t = acc(t, w * shift_cols(m, dx - 1))
            fk = None
            for dy in range(3):
                w = float(colv[dy])
                if w != 0.0:
                    fk = acc(fk, w * shift_rows(t, dy - 1))
            f[k] = fk
        f = [fk if fk is not None else m * 0.0 for fk in f]

        # --- learned Kf->Kf 3x3 conv + BN + hardtanh + (rich - poor), ko-outermost.
        #     "mix-then-shift": per tap, mix the Kf input planes first, then do a
        #     single masked shift -- only one output plane live at a time.
        for ko in range(Kf):
            g = None
            for dy in range(3):
                for dx in range(3):
                    h = None
                    for ki in range(Kf):
                        wtap = cw_ref[((ko * Kf + ki) * 3 + dy) * 3 + dx]
                        h = acc(h, f[ki] * wtap)
                    g = acc(g, shift_cols(shift_rows(h, dy - 1), dx - 1))
            y = jnp.clip(g * sc_ref[ko] + sh_ref[ko], -1.0, 1.0)
            # poor slab is rich_w lanes to the right of the rich slab
            d = y - pltpu.roll(y, shift=Lp - rich_w, axis=1)
            out_ref[0, ko] = d[:, :Lout]

    return kernel


def fingerprint_extractor(x_rich, x_poor, hp_w, conv_w, gamma, beta,
                          running_mean, running_var, eps=1e-5, *, batch_tile=None):
    """hp_w is a constant buffer (register_buffer in the module): it is baked into
    the kernel at trace time.  All other parameters are runtime inputs."""
    N, C, H, W = x_rich.shape
    Kf = int(hp_w.shape[0])
    f32 = jnp.float32

    # --- tile choice: pack (branch, batch_tile, W) into lanes, aiming for ~512
    #     useful lanes per step (per-step overhead amortization).  VMEM is never
    #     the limiter for blocks this small (v5e/v6e/v7x alike).  Pass batch_tile
    #     explicitly to trade lane width for vreg pressure if needed.
    TARGET_LANES = 512
    if batch_tile is None:
        bt = max(1, TARGET_LANES // (2 * W))
    else:
        bt = max(1, int(batch_tile))
    bt = min(bt, N)                       # don't pad a tiny batch far beyond N
    G = -(-N // bt)                       # grid size (batch is padded up to G*bt)
    Np = G * bt
    L = 2 * bt * W                        # useful packed lanes (rich slab then poor)
    Lp = -(-L // 128) * 128               # lane-dense input width
    Lout = -(-(bt * W) // 128) * 128      # only the rich(-poor) slab is written back

    hp_np = np.asarray(hp_w, np.float64).reshape(Kf, 1, 3, 3)
    assert hp_np.shape[-2:] == (3, 3)
    kernel = _make_kernel(C, H, W, Kf, bt, Lp, Lout, hp_np)

    @jax.jit
    def run(x_rich, x_poor, conv_w, gamma, beta, rmean, rvar):
        xr = x_rich.astype(f32)
        xp = x_poor.astype(f32)
        if Np != N:
            padn = ((0, Np - N), (0, 0), (0, 0), (0, 0))
            xr = jnp.pad(xr, padn)
            xp = jnp.pad(xp, padn)
        # lanes = (branch, batch-in-tile, column); fused into one XLA copy under jit.
        xs = jnp.stack([xr, xp], axis=1)                          # (Np, 2, C, H, W)
        xs = xs.reshape(G, bt, 2, C, H, W).transpose(0, 3, 4, 2, 1, 5)
        xs = xs.reshape(G, C, H, L)
        if Lp != L:
            xs = jnp.pad(xs, ((0, 0), (0, 0), (0, 0), (0, Lp - L)))

        # fold BatchNorm (inference mode) into per-channel scale / shift
        scale = (gamma / jnp.sqrt(rvar + eps)).astype(f32)
        shift = (beta - rmean * scale).astype(f32)
        cv_flat = conv_w.reshape(-1).astype(f32)                  # (Kf*Kf*9,)

        out_packed = pl.pallas_call(
            kernel,
            out_shape=jax.ShapeDtypeStruct((G, Kf, H, Lout), f32),
            grid=(G,),
            in_specs=[
                pl.BlockSpec(memory_space=pltpu.MemorySpace.SMEM),    # conv weight
                pl.BlockSpec(memory_space=pltpu.MemorySpace.SMEM),    # bn scale
                pl.BlockSpec(memory_space=pltpu.MemorySpace.SMEM),    # bn shift
                pl.BlockSpec((1, C, H, Lp), lambda g: (g, 0, 0, 0)),  # packed inputs
            ],
            out_specs=pl.BlockSpec((1, Kf, H, Lout), lambda g: (g, 0, 0, 0)),
            compiler_params=pltpu.CompilerParams(dimension_semantics=("parallel",)),
        )(cv_flat, scale, shift, xs)

        # unpack the rich(-poor) slab back to (N, Kf, H, W)
        o = out_packed[..., :bt * W].reshape(G, Kf, H, bt, W)
        o = o.transpose(0, 3, 1, 2, 4).reshape(Np, Kf, H, W)
        return o[:N]

    return run(x_rich, x_poor, conv_w, gamma, beta, running_mean, running_var)


def reference(x_rich, x_poor, hp_w, conv_w, gamma, beta, rmean, rvar, eps=1e-5):
    dn = ("NCHW", "OIHW", "NCHW")

    def branch(x):
        m = jnp.mean(x, axis=1, keepdims=True)
        f = lax.conv_general_dilated(m, hp_w, (1, 1), "SAME", dimension_numbers=dn)
        g = lax.conv_general_dilated(f, conv_w, (1, 1), "SAME", dimension_numbers=dn)
        g = (g - rmean[None, :, None, None]) / jnp.sqrt(rvar + eps)[None, :, None, None]
        g = g * gamma[None, :, None, None] + beta[None, :, None, None]
        return jnp.clip(g, -1.0, 1.0)

    return branch(x_rich) - branch(x_poor)


if __name__ == "__main__":
    key = jax.random.PRNGKey(0)
    k1, k2, k3, k4, k5, k6, k7, k8, k9 = jax.random.split(key, 9)

    # --- primary shapes (module-consistent): N=2, C=4, 16x16 images
    N, C, H, W = 2, 4, 16, 16
    x_rich = jax.random.normal(k1, (N, C, H, W), jnp.float32)
    x_poor = jax.random.normal(k2, (N, C, H, W), jnp.float32)

    # deterministic synthetic parameters (shapes follow the module __init__)
    hp_w = jnp.stack([jnp.asarray(f) for f in HP_FILTERS])[:, None, :, :]   # (K,1,3,3)
    conv_w = 0.2 * jax.random.normal(k3, (K, K, 3, 3), jnp.float32)         # Conv2d(K,K,3)
    gamma = 1.0 + 0.1 * jax.random.normal(k4, (K,), jnp.float32)            # bn.weight
    beta = 0.1 * jax.random.normal(k5, (K,), jnp.float32)                   # bn.bias
    rmean = 0.1 * jax.random.normal(k6, (K,), jnp.float32)                  # bn.running_mean
    rvar = jnp.abs(jax.random.normal(k7, (K,), jnp.float32)) + 0.5          # bn.running_var

    out = fingerprint_extractor(x_rich, x_poor, hp_w, conv_w, gamma, beta, rmean, rvar)
    out = jax.block_until_ready(out)
    ref = reference(x_rich, x_poor, hp_w, conv_w, gamma, beta, rmean, rvar)
    assert out.shape == (N, K, H, W)
    np.testing.assert_allclose(np.asarray(out), np.asarray(ref), rtol=1e-4, atol=1e-4)

    # --- secondary shapes: exercises batch padding, a multi-step grid and the
    #     wide (512-lane) tile path
    N2, C2, H2, W2 = 5, 2, 8, 64
    xr2 = jax.random.normal(k8, (N2, C2, H2, W2), jnp.float32)
    xp2 = jax.random.normal(k9, (N2, C2, H2, W2), jnp.float32)
    out2 = jax.block_until_ready(
        fingerprint_extractor(xr2, xp2, hp_w, conv_w, gamma, beta, rmean, rvar))
    ref2 = reference(xr2, xp2, hp_w, conv_w, gamma, beta, rmean, rvar)
    np.testing.assert_allclose(np.asarray(out2), np.asarray(ref2), rtol=1e-4, atol=1e-4)

    print("KERNEL_OK")
</pallas_src>

<mosaic_0001>
module attributes {stable_mosaic.version = 11 : i64} {
  func.func @kernel(%arg0: i32, %arg1: memref<81xf32, #tpu.memory_space<smem>>, %arg2: memref<3xf32, #tpu.memory_space<smem>>, %arg3: memref<3xf32, #tpu.memory_space<smem>>, %arg4: memref<1x4x16x128xf32, #tpu.memory_space<vmem>>, %arg5: memref<1x3x16x128xf32, #tpu.memory_space<vmem>>) attributes {dimension_semantics = [#tpu.dimension_semantics<parallel>], iteration_bounds = array<i64: 1>, scalar_prefetch = 0 : i64, scratch_operands = 0 : i64, tpu.core_type = #tpu.core_type<tc>, window_params = [{transform_indices = @transform_0, window_bounds = array<i64: 81>}, {transform_indices = @transform_1, window_bounds = array<i64: 3>}, {transform_indices = @transform_2, window_bounds = array<i64: 3>}, {transform_indices = @transform_3, window_bounds = array<i64: 1, 4, 16, 128>}, {transform_indices = @transform_4, window_bounds = array<i64: 1, 3, 16, 128>}]} {
    %0 = tpu.iota {dimensions = array<i32: 1>} : vector<1x128xi32>
    %c16_i32 = arith.constant 16 : i32
    %c0_i32 = arith.constant 0 : i32
    %1 = arith.cmpi eq, %c16_i32, %c0_i32 : i32
    %c1_i32 = arith.constant 1 : i32
    %2 = arith.select %1, %c1_i32, %c16_i32 : i32
    %3 = vector.broadcast %2 : i32 to vector<1x128xi32>
    %4 = arith.remsi %0, %3 : vector<1x128xi32>
    %c0_i32_0 = arith.constant 0 : i32
    %5 = vector.broadcast %c0_i32_0 : i32 to vector<1x128xi32>
    %6 = arith.cmpi ne, %4, %5 : vector<1x128xi32>
    %c0_i32_1 = arith.constant 0 : i32
    %7 = vector.broadcast %c0_i32_1 : i32 to vector<1x128xi32>
    %8 = arith.cmpi slt, %4, %7 : vector<1x128xi32>
    %c0_i32_2 = arith.constant 0 : i32
    %9 = arith.cmpi slt, %2, %c0_i32_2 : i32
    %10 = vector.broadcast %9 : i1 to vector<1x128xi1>
    %11 = vector.broadcast %10 : vector<1x128xi1> to vector<1x128xi1>
    %12 = arith.xori %8, %11 : vector<1x128xi1>
    %13 = arith.andi %12, %6 : vector<1x128xi1>
    %14 = vector.broadcast %2 : i32 to vector<1x128xi32>
    %15 = arith.addi %4, %14 : vector<1x128xi32>
    %16 = arith.select %13, %15, %4 : vector<1x128xi1>, vector<1x128xi32>
    %c0_i32_3 = arith.constant 0 : i32
    %17 = vector.broadcast %c0_i32_3 : i32 to vector<1x128xi32>
    %18 = arith.cmpi ne, %16, %17 : vector<1x128xi32>
    %19 = arith.extui %18 : vector<1x128xi1> to vector<1x128xi32>
    %20 = arith.sitofp %19 : vector<1x128xi32> to vector<1x128xf32>
    %c15_i32 = arith.constant 15 : i32
    %21 = vector.broadcast %c15_i32 : i32 to vector<1x128xi32>
    %22 = arith.cmpi ne, %16, %21 : vector<1x128xi32>
    %23 = arith.extui %22 : vector<1x128xi1> to vector<1x128xi32>
    %24 = arith.sitofp %23 : vector<1x128xi32> to vector<1x128xf32>
    %25 = tpu.iota {dimensions = array<i32: 0>} : vector<16x128xi32>
    %c0_i32_4 = arith.constant 0 : i32
    %26 = vector.broadcast %c0_i32_4 : i32 to vector<16x128xi32>
    %27 = arith.cmpi ne, %25, %26 : vector<16x128xi32>
    %28 = arith.extui %27 : vector<16x128xi1> to vector<16x128xi32>
    %29 = arith.sitofp %28 : vector<16x128xi32> to vector<16x128xf32>
    %c15_i32_5 = arith.constant 15 : i32
    %30 = vector.broadcast %c15_i32_5 : i32 to vector<16x128xi32>
    %31 = arith.cmpi ne, %25, %30 : vector<16x128xi32>
    %32 = arith.extui %31 : vector<16x128xi1> to vector<16x128xi32>
    %33 = arith.sitofp %32 : vector<16x128xi32> to vector<16x128xf32>
    %c0 = arith.constant 0 : index
    %c0_6 = arith.constant 0 : index
    %c0_7 = arith.constant 0 : index
    %c0_8 = arith.constant 0 : index
    %34 = vector.load %arg4[%c0, %c0_6, %c0_7, %c0_8] : memref<1x4x16x128xf32, #tpu.memory_space<vmem>>, vector<1x1x16x128xf32>
    %35 = vector.shape_cast %34 : vector<1x1x16x128xf32> to vector<16x128xf32>
    %c0_9 = arith.constant 0 : index
    %c1 = arith.constant 1 : index
    %c0_10 = arith.constant 0 : index
    %c0_11 = arith.constant 0 : index
    %36 = vector.load %arg4[%c0_9, %c1, %c0_10, %c0_11] : memref<1x4x16x128xf32, #tpu.memory_space<vmem>>, vector<1x1x16x128xf32>
    %37 = vector.shape_cast %36 : vector<1x1x16x128xf32> to vector<16x128xf32>
    %38 = arith.addf %35, %37 : vector<16x128xf32>
    %c0_12 = arith.constant 0 : index
    %c2 = arith.constant 2 : index
    %c0_13 = arith.constant 0 : index
    %c0_14 = arith.constant 0 : index
    %39 = vector.load %arg4[%c0_12, %c2, %c0_13, %c0_14] : memref<1x4x16x128xf32, #tpu.memory_space<vmem>>, vector<1x1x16x128xf32>
    %40 = vector.shape_cast %39 : vector<1x1x16x128xf32> to vector<16x128xf32>
    %41 = arith.addf %38, %40 : vector<16x128xf32>
    %c0_15 = arith.constant 0 : index
    %c3 = arith.constant 3 : index
    %c0_16 = arith.constant 0 : index
    %c0_17 = arith.constant 0 : index
    %42 = vector.load %arg4[%c0_15, %c3, %c0_16, %c0_17] : memref<1x4x16x128xf32, #tpu.memory_space<vmem>>, vector<1x1x16x128xf32>
    %43 = vector.shape_cast %42 : vector<1x1x16x128xf32> to vector<16x128xf32>
    %44 = arith.addf %41, %43 : vector<16x128xf32>
    %cst = arith.constant 2.500000e-01 : f32
    %45 = vector.broadcast %cst : f32 to vector<16x128xf32>
    %46 = arith.mulf %44, %45 : vector<16x128xf32>
    %c1_i32_18 = arith.constant 1 : i32
    %47 = tpu.dynamic_rotate %46 by %c1_i32_18 dim 0 : vector<16x128xf32>, i32 -> vector<16x128xf32>
    %48 = arith.mulf %47, %29 : vector<16x128xf32>
    %cst_19 = arith.constant 2.500000e-01 : f32
    %49 = vector.broadcast %cst_19 : f32 to vector<16x128xf32>
    %50 = arith.mulf %49, %48 : vector<16x128xf32>
    %c1_i32_20 = arith.constant 1 : i32
    %51 = tpu.dynamic_rotate %46 by %c1_i32_20 dim 1 : vector<16x128xf32>, i32 -> vector<16x128xf32>
    %52 = vector.broadcast %20 : vector<1x128xf32> to vector<16x128xf32>
    %53 = arith.mulf %51, %52 : vector<16x128xf32>
    %cst_21 = arith.constant 5.000000e-01 : f32
    %54 = vector.broadcast %cst_21 : f32 to vector<16x128xf32>
    %55 = arith.mulf %54, %53 : vector<16x128xf32>
    %cst_22 = arith.constant 2.500000e-01 : f32
    %56 = vector.broadcast %cst_22 : f32 to vector<16x128xf32>
    %57 = arith.mulf %56, %53 : vector<16x128xf32>
    %58 = arith.addf %50, %57 : vector<16x128xf32>
    %cst_23 = arith.constant -1.000000e+00 : f32
    %59 = vector.broadcast %cst_23 : f32 to vector<16x128xf32>
    %60 = arith.mulf %59, %46 : vector<16x128xf32>
    %61 = arith.addf %55, %60 : vector<16x128xf32>
    %cst_24 = arith.constant -1.000000e+00 : f32
    %62 = vector.broadcast %cst_24 : f32 to vector<16x128xf32>
    %63 = arith.mulf %62, %46 : vector<16x128xf32>
    %64 = arith.addf %58, %63 : vector<16x128xf32>
    %c127_i32 = arith.constant 127 : i32
    %65 = tpu.dynamic_rotate %46 by %c127_i32 dim 1 : vector<16x128xf32>, i32 -> vector<16x128xf32>
    %66 = vector.broadcast %24 : vector<1x128xf32> to vector<16x128xf32>
    %67 = arith.mulf %65, %66 : vector<16x128xf32>
    %cst_25 = arith.constant 5.000000e-01 : f32
    %68 = vector.broadcast %cst_25 : f32 to vector<16x128xf32>
    %69 = arith.mulf %68, %67 : vector<16x128xf32>
    %70 = arith.addf %61, %69 : vector<16x128xf32>
    %cst_26 = arith.constant 2.500000e-01 : f32
    %71 = vector.broadcast %cst_26 : f32 to vector<16x128xf32>
    %72 = arith.mulf %71, %67 : vector<16x128xf32>
    %73 = arith.addf %64, %72 : vector<16x128xf32>
    %c15_i32_27 = arith.constant 15 : i32
    %74 = tpu.dynamic_rotate %46 by %c15_i32_27 dim 0 : vector<16x128xf32>, i32 -> vector<16x128xf32>
    %75 = arith.mulf %74, %33 : vector<16x128xf32>
    %cst_28 = arith.constant 2.500000e-01 : f32
    %76 = vector.broadcast %cst_28 : f32 to vector<16x128xf32>
    %77 = arith.mulf %76, %75 : vector<16x128xf32>
    %78 = arith.addf %73, %77 : vector<16x128xf32>
    %c1_i32_29 = arith.constant 1 : i32
    %79 = tpu.dynamic_rotate %46 by %c1_i32_29 dim 1 : vector<16x128xf32>, i32 -> vector<16x128xf32>
    %80 = vector.broadcast %20 : vector<1x128xf32> to vector<16x128xf32>
    %81 = arith.mulf %79, %80 : vector<16x128xf32>
    %cst_30 = arith.constant -0.408248305 : f32
    %82 = vector.broadcast %cst_30 : f32 to vector<16x128xf32>
    %83 = arith.mulf %82, %81 : vector<16x128xf32>
    %cst_31 = arith.constant 0.816496611 : f32
    %84 = vector.broadcast %cst_31 : f32 to vector<16x128xf32>
    %85 = arith.mulf %84, %46 : vector<16x128xf32>
    %86 = arith.addf %83, %85 : vector<16x128xf32>
    %c127_i32_32 = arith.constant 127 : i32
    %87 = tpu.dynamic_rotate %46 by %c127_i32_32 dim 1 : vector<16x128xf32>, i32 -> vector<16x128xf32>
    %88 = vector.broadcast %24 : vector<1x128xf32> to vector<16x128xf32>
    %89 = arith.mulf %87, %88 : vector<16x128xf32>
    %cst_33 = arith.constant -0.408248305 : f32
    %90 = vector.broadcast %cst_33 : f32 to vector<16x128xf32>
    %91 = arith.mulf %90, %89 : vector<16x128xf32>
    %92 = arith.addf %86, %91 : vector<16x128xf32>
    %c1_i32_34 = arith.constant 1 : i32
    %93 = tpu.dynamic_rotate %92 by %c1_i32_34 dim 0 : vector<16x128xf32>, i32 -> vector<16x128xf32>
    %94 = arith.mulf %93, %29 : vector<16x128xf32>
    %cst_35 = arith.constant -0.612372457 : f32
    %95 = vector.broadcast %cst_35 : f32 to vector<16x128xf32>
    %96 = arith.mulf %95, %94 : vector<16x128xf32>
    %cst_36 = arith.constant 1.22474492 : f32
    %97 = vector.broadcast %cst_36 : f32 to vector<16x128xf32>
    %98 = arith.mulf %97, %92 : vector<16x128xf32>
    %99 = arith.addf %96, %98 : vector<16x128xf32>
    %c15_i32_37 = arith.constant 15 : i32
    %100 = tpu.dynamic_rotate %92 by %c15_i32_37 dim 0 : vector<16x128xf32>, i32 -> vector<16x128xf32>
    %101 = arith.mulf %100, %33 : vector<16x128xf32>
    %cst_38 = arith.constant -0.612372457 : f32
    %102 = vector.broadcast %cst_38 : f32 to vector<16x128xf32>
    %103 = arith.mulf %102, %101 : vector<16x128xf32>
    %104 = arith.addf %99, %103 : vector<16x128xf32>
    %c0_39 = arith.constant 0 : index
    %105 = memref.load %arg1[%c0_39] : memref<81xf32, #tpu.memory_space<smem>>
    %106 = vector.broadcast %105 : f32 to vector<16x128xf32>
    %107 = arith.mulf %70, %106 : vector<16x128xf32>
    %c9 = arith.constant 9 : index
    %108 = memref.load %arg1[%c9] : memref<81xf32, #tpu.memory_space<smem>>
    %109 = vector.broadcast %108 : f32 to vector<16x128xf32>
    %110 = arith.mulf %104, %109 : vector<16x128xf32>
    %111 = arith.addf %107, %110 : vector<16x128xf32>
    %c18 = arith.constant 18 : index
    %112 = memref.load %arg1[%c18] : memref<81xf32, #tpu.memory_space<smem>>
    %113 = vector.broadcast %112 : f32 to vector<16x128xf32>
    %114 = arith.mulf %78, %113 : vector<16x128xf32>
    %115 = arith.addf %111, %114 : vector<16x128xf32>
    %c1_i32_40 = arith.constant 1 : i32
    %116 = tpu.dynamic_rotate %115 by %c1_i32_40 dim 0 : vector<16x128xf32>, i32 -> vector<16x128xf32>
    %117 = arith.mulf %116, %29 : vector<16x128xf32>
    %c1_i32_41 = arith.constant 1 : i32
    %118 = tpu.dynamic_rotate %117 by %c1_i32_41 dim 1 : vector<16x128xf32>, i32 -> vector<16x128xf32>
    %119 = vector.broadcast %20 : vector<1x128xf32> to vector<16x128xf32>
    %120 = arith.mulf %118, %119 : vector<16x128xf32>
    %c1_42 = arith.constant 1 : index
    %121 = memref.load %arg1[%c1_42] : memref<81xf32, #tpu.memory_space<smem>>
    %122 = vector.broadcast %121 : f32 to vector<16x128xf32>
    %123 = arith.mulf %70, %122 : vector<16x128xf32>
    %c10 = arith.constant 10 : index
    %124 = memref.load %arg1[%c10] : memref<81xf32, #tpu.memory_space<smem>>
    %125 = vector.broadcast %124 : f32 to vector<16x128xf32>
    %126 = arith.mulf %104, %125 : vector<16x128xf32>
    %127 = arith.addf %123, %126 : vector<16x128xf32>
    %c19 = arith.constant 19 : index
    %128 = memref.load %arg1[%c19] : memref<81xf32, #tpu.memory_space<smem>>
    %129 = vector.broadcast %128 : f32 to vector<16x128xf32>
    %130 = arith.mulf %78, %129 : vector<16x128xf32>
    %131 = arith.addf %127, %130 : vector<16x128xf32>
    %c1_i32_43 = arith.constant 1 : i32
    %132 = tpu.dynamic_rotate %131 by %c1_i32_43 dim 0 : vector<16x128xf32>, i32 -> vector<16x128xf32>
    %133 = arith.mulf %132, %29 : vector<16x128xf32>
    %134 = arith.addf %120, %133 : vector<16x128xf32>
    %c2_44 = arith.constant 2 : index
    %135 = memref.load %arg1[%c2_44] : memref<81xf32, #tpu.memory_space<smem>>
    %136 = vector.broadcast %135 : f32 to vector<16x128xf32>
    %137 = arith.mulf %70, %136 : vector<16x128xf32>
    %c11 = arith.constant 11 : index
    %138 = memref.load %arg1[%c11] : memref<81xf32, #tpu.memory_space<smem>>
    %139 = vector.broadcast %138 : f32 to vector<16x128xf32>
    %140 = arith.mulf %104, %139 : vector<16x128xf32>
    %141 = arith.addf %137, %140 : vector<16x128xf32>
    %c20 = arith.constant 20 : index
    %142 = memref.load %arg1[%c20] : memref<81xf32, #tpu.memory_space<smem>>
    %143 = vector.broadcast %142 : f32 to vector<16x128xf32>
    %144 = arith.mulf %78, %143 : vector<16x128xf32>
    %145 = arith.addf %141, %144 : vector<16x128xf32>
    %c1_i32_45 = arith.constant 1 : i32
    %146 = tpu.dynamic_rotate %145 by %c1_i32_45 dim 0 : vector<16x128xf32>, i32 -> vector<16x128xf32>
    %147 = arith.mulf %146, %29 : vector<16x128xf32>
    %c127_i32_46 = arith.constant 127 : i32
    %148 = tpu.dynamic_rotate %147 by %c127_i32_46 dim 1 : vector<16x128xf32>, i32 -> vector<16x128xf32>
    %149 = vector.broadcast %24 : vector<1x128xf32> to vector<16x128xf32>
    %150 = arith.mulf %148, %149 : vector<16x128xf32>
    %151 = arith.addf %134, %150 : vector<16x128xf32>
    %c3_47 = arith.constant 3 : index
    %152 = memref.load %arg1[%c3_47] : memref<81xf32, #tpu.memory_space<smem>>
    %153 = vector.broadcast %152 : f32 to vector<16x128xf32>
    %154 = arith.mulf %70, %153 : vector<16x128xf32>
    %c12 = arith.constant 12 : index
    %155 = memref.load %arg1[%c12] : memref<81xf32, #tpu.memory_space<smem>>
    %156 = vector.broadcast %155 : f32 to vector<16x128xf32>
    %157 = arith.mulf %104, %156 : vector<16x128xf32>
    %158 = arith.addf %154, %157 : vector<16x128xf32>
    %c21 = arith.constant 21 : index
    %159 = memref.load %arg1[%c21] : memref<81xf32, #tpu.memory_space<smem>>
    %160 = vector.broadcast %159 : f32 to vector<16x128xf32>
    %161 = arith.mulf %78, %160 : vector<16x128xf32>
    %162 = arith.addf %158, %161 : vector<16x128xf32>
    %c1_i32_48 = arith.constant 1 : i32
    %163 = tpu.dynamic_rotate %162 by %c1_i32_48 dim 1 : vector<16x128xf32>, i32 -> vector<16x128xf32>
    %164 = vector.broadcast %20 : vector<1x128xf32> to vector<16x128xf32>
    %165 = arith.mulf %163, %164 : vector<16x128xf32>
    %166 = arith.addf %151, %165 : vector<16x128xf32>
    %c4 = arith.constant 4 : index
    %167 = memref.load %arg1[%c4] : memref<81xf32, #tpu.memory_space<smem>>
    %168 = vector.broadcast %167 : f32 to vector<16x128xf32>
    %169 = arith.mulf %70, %168 : vector<16x128xf32>
    %c13 = arith.constant 13 : index
    %170 = memref.load %arg1[%c13] : memref<81xf32, #tpu.memory_space<smem>>
    %171 = vector.broadcast %170 : f32 to vector<16x128xf32>
    %172 = arith.mulf %104, %171 : vector<16x128xf32>
    %173 = arith.addf %169, %172 : vector<16x128xf32>
    %c22 = arith.constant 22 : index
    %174 = memref.load %arg1[%c22] : memref<81xf32, #tpu.memory_space<smem>>
    %175 = vector.broadcast %174 : f32 to vector<16x128xf32>
    %176 = arith.mulf %78, %175 : vector<16x128xf32>
    %177 = arith.addf %173, %176 : vector<16x128xf32>
    %178 = arith.addf %166, %177 : vector<16x128xf32>
    %c5 = arith.constant 5 : index
    %179 = memref.load %arg1[%c5] : memref<81xf32, #tpu.memory_space<smem>>
    %180 = vector.broadcast %179 : f32 to vector<16x128xf32>
    %181 = arith.mulf %70, %180 : vector<16x128xf32>
    %c14 = arith.constant 14 : index
    %182 = memref.load %arg1[%c14] : memref<81xf32, #tpu.memory_space<smem>>
    %183 = vector.broadcast %182 : f32 to vector<16x128xf32>
    %184 = arith.mulf %104, %183 : vector<16x128xf32>
    %185 = arith.addf %181, %184 : vector<16x128xf32>
    %c23 = arith.constant 23 : index
    %186 = memref.load %arg1[%c23] : memref<81xf32, #tpu.memory_space<smem>>
    %187 = vector.broadcast %186 : f32 to vector<16x128xf32>
    %188 = arith.mulf %78, %187 : vector<16x128xf32>
    %189 = arith.addf %185, %188 : vector<16x128xf32>
    %c127_i32_49 = arith.constant 127 : i32
    %190 = tpu.dynamic_rotate %189 by %c127_i32_49 dim 1 : vector<16x128xf32>, i32 -> vector<16x128xf32>
    %191 = vector.broadcast %24 : vector<1x128xf32> to vector<16x128xf32>
    %192 = arith.mulf %190, %191 : vector<16x128xf32>
    %193 = arith.addf %178, %192 : vector<16x128xf32>
    %c6 = arith.constant 6 : index
    %194 = memref.load %arg1[%c6] : memref<81xf32, #tpu.memory_space<smem>>
    %195 = vector.broadcast %194 : f32 to vector<16x128xf32>
    %196 = arith.mulf %70, %195 : vector<16x128xf32>
    %c15 = arith.constant 15 : index
    %197 = memref.load %arg1[%c15] : memref<81xf32, #tpu.memory_space<smem>>
    %198 = vector.broadcast %197 : f32 to vector<16x128xf32>
    %199 = arith.mulf %104, %198 : vector<16x128xf32>
    %200 = arith.addf %196, %199 : vector<16x128xf32>
    %c24 = arith.constant 24 : index
    %201 = memref.load %arg1[%c24] : memref<81xf32, #tpu.memory_space<smem>>
    %202 = vector.broadcast %201 : f32 to vector<16x128xf32>
    %203 = arith.mulf %78, %202 : vector<16x128xf32>
    %204 = arith.addf %200, %203 : vector<16x128xf32>
    %c15_i32_50 = arith.constant 15 : i32
    %205 = tpu.dynamic_rotate %204 by %c15_i32_50 dim 0 : vector<16x128xf32>, i32 -> vector<16x128xf32>
    %206 = arith.mulf %205, %33 : vector<16x128xf32>
    %c1_i32_51 = arith.constant 1 : i32
    %207 = tpu.dynamic_rotate %206 by %c1_i32_51 dim 1 : vector<16x128xf32>, i32 -> vector<16x128xf32>
    %208 = vector.broadcast %20 : vector<1x128xf32> to vector<16x128xf32>
    %209 = arith.mulf %207, %208 : vector<16x128xf32>
    %210 = arith.addf %193, %209 : vector<16x128xf32>
    %c7 = arith.constant 7 : index
    %211 = memref.load %arg1[%c7] : memref<81xf32, #tpu.memory_space<smem>>
    %212 = vector.broadcast %211 : f32 to vector<16x128xf32>
    %213 = arith.mulf %70, %212 : vector<16x128xf32>
    %c16 = arith.constant 16 : index
    %214 = memref.load %arg1[%c16] : memref<81xf32, #tpu.memory_space<smem>>
    %215 = vector.broadcast %214 : f32 to vector<16x128xf32>
    %216 = arith.mulf %104, %215 : vector<16x128xf32>
    %217 = arith.addf %213, %216 : vector<16x128xf32>
    %c25 = arith.constant 25 : index
    %218 = memref.load %arg1[%c25] : memref<81xf32, #tpu.memory_space<smem>>
    %219 = vector.broadcast %218 : f32 to vector<16x128xf32>
    %220 = arith.mulf %78, %219 : vector<16x128xf32>
    %221 = arith.addf %217, %220 : vector<16x128xf32>
    %c15_i32_52 = arith.constant 15 : i32
    %222 = tpu.dynamic_rotate %221 by %c15_i32_52 dim 0 : vector<16x128xf32>, i32 -> vector<16x128xf32>
    %223 = arith.mulf %222, %33 : vector<16x128xf32>
    %224 = arith.addf %210, %223 : vector<16x128xf32>
    %c8 = arith.constant 8 : index
    %225 = memref.load %arg1[%c8] : memref<81xf32, #tpu.memory_space<smem>>
    %226 = vector.broadcast %225 : f32 to vector<16x128xf32>
    %227 = arith.mulf %70, %226 : vector<16x128xf32>
    %c17 = arith.constant 17 : index
    %228 = memref.load %arg1[%c17] : memref<81xf32, #tpu.memory_space<smem>>
    %229 = vector.broadcast %228 : f32 to vector<16x128xf32>
    %230 = arith.mulf %104, %229 : vector<16x128xf32>
    %231 = arith.addf %227, %230 : vector<16x128xf32>
    %c26 = arith.constant 26 : index
    %232 = memref.load %arg1[%c26] : memref<81xf32, #tpu.memory_space<smem>>
    %233 = vector.broadcast %232 : f32 to vector<16x128xf32>
    %234 = arith.mulf %78, %233 : vector<16x128xf32>
    %235 = arith.addf %231, %234 : vector<16x128xf32>
    %c15_i32_53 = arith.constant 15 : i32
    %236 = tpu.dynamic_rotate %235 by %c15_i32_53 dim 0 : vector<16x128xf32>, i32 -> vector<16x128xf32>
    %237 = arith.mulf %236, %33 : vector<16x128xf32>
    %c127_i32_54 = arith.constant 127 : i32
    %238 = tpu.dynamic_rotate %237 by %c127_i32_54 dim 1 : vector<16x128xf32>, i32 -> vector<16x128xf32>
    %239 = vector.broadcast %24 : vector<1x128xf32> to vector<16x128xf32>
    %240 = arith.mulf %238, %239 : vector<16x128xf32>
    %241 = arith.addf %224, %240 : vector<16x128xf32>
    %c0_55 = arith.constant 0 : index
    %242 = memref.load %arg2[%c0_55] : memref<3xf32, #tpu.memory_space<smem>>
    %243 = vector.broadcast %242 : f32 to vector<16x128xf32>
    %244 = arith.mulf %241, %243 : vector<16x128xf32>
    %c0_56 = arith.constant 0 : index
    %245 = memref.load %arg3[%c0_56] : memref<3xf32, #tpu.memory_space<smem>>
    %246 = vector.broadcast %245 : f32 to vector<16x128xf32>
    %247 = arith.addf %244, %246 : vector<16x128xf32>
    %cst_57 = arith.constant -1.000000e+00 : f32
    %cst_58 = arith.constant 1.000000e+00 : f32
    %248 = vector.broadcast %cst_57 : f32 to vector<16x128xf32>
    %249 = arith.maximumf %248, %247 : vector<16x128xf32>
    %250 = vector.broadcast %cst_58 : f32 to vector<16x128xf32>
    %251 = arith.minimumf %250, %249 : vector<16x128xf32>
    %c96_i32 = arith.constant 96 : i32
    %252 = tpu.dynamic_rotate %251 by %c96_i32 dim 1 : vector<16x128xf32>, i32 -> vector<16x128xf32>
    %253 = arith.subf %251, %252 : vector<16x128xf32>
    %c0_59 = arith.constant 0 : index
    %c0_60 = arith.constant 0 : index
    %c0_61 = arith.constant 0 : index
    %c0_62 = arith.constant 0 : index
    %254 = vector.load %arg5[%c0_59, %c0_60, %c0_61, %c0_62] : memref<1x3x16x128xf32, #tpu.memory_space<vmem>>, vector<1x1x16x128xf32>
    %255 = vector.shape_cast %254 : vector<1x1x16x128xf32> to vector<16x128xf32>
    %256 = vector.shape_cast %253 : vector<16x128xf32> to vector<1x1x16x128xf32>
    tpu.vector_store %arg5[%c0_59, %c0_60, %c0_61, %c0_62], %256 {strides = array<i32>} : memref<1x3x16x128xf32, #tpu.memory_space<vmem>>, vector<1x1x16x128xf32>,
    %c27 = arith.constant 27 : index
    %257 = memref.load %arg1[%c27] : memref<81xf32, #tpu.memory_space<smem>>
    %258 = vector.broadcast %257 : f32 to vector<16x128xf32>
    %259 = arith.mulf %70, %258 : vector<16x128xf32>
    %c36 = arith.constant 36 : index
    %260 = memref.load %arg1[%c36] : memref<81xf32, #tpu.memory_space<smem>>
    %261 = vector.broadcast %260 : f32 to vector<16x128xf32>
    %262 = arith.mulf %104, %261 : vector<16x128xf32>
    %263 = arith.addf %259, %262 : vector<16x128xf32>
    %c45 = arith.constant 45 : index
    %264 = memref.load %arg1[%c45] : memref<81xf32, #tpu.memory_space<smem>>
    %265 = vector.broadcast %264 : f32 to vector<16x128xf32>
    %266 = arith.mulf %78, %265 : vector<16x128xf32>
    %267 = arith.addf %263, %266 : vector<16x128xf32>
    %c1_i32_63 = arith.constant 1 : i32
    %268 = tpu.dynamic_rotate %267 by %c1_i32_63 dim 0 : vector<16x128xf32>, i32 -> vector<16x128xf32>
    %269 = arith.mulf %268, %29 : vector<16x128xf32>
    %c1_i32_64 = arith.constant 1 : i32
    %270 = tpu.dynamic_rotate %269 by %c1_i32_64 dim 1 : vector<16x128xf32>, i32 -> vector<16x128xf32>
    %271 = vector.broadcast %20 : vector<1x128xf32> to vector<16x128xf32>
    %272 = arith.mulf %270, %271 : vector<16x128xf32>
    %c28 = arith.constant 28 : index
    %273 = memref.load %arg1[%c28] : memref<81xf32, #tpu.memory_space<smem>>
    %274 = vector.broadcast %273 : f32 to vector<16x128xf32>
    %275 = arith.mulf %70, %274 : vector<16x128xf32>
    %c37 = arith.constant 37 : index
    %276 = memref.load %arg1[%c37] : memref<81xf32, #tpu.memory_space<smem>>
    %277 = vector.broadcast %276 : f32 to vector<16x128xf32>
    %278 = arith.mulf %104, %277 : vector<16x128xf32>
    %279 = arith.addf %275, %278 : vector<16x128xf32>
    %c46 = arith.constant 46 : index
    %280 = memref.load %arg1[%c46] : memref<81xf32, #tpu.memory_space<smem>>
    %281 = vector.broadcast %280 : f32 to vector<16x128xf32>
    %282 = arith.mulf %78, %281 : vector<16x128xf32>
    %283 = arith.addf %279, %282 : vector<16x128xf32>
    %c1_i32_65 = arith.constant 1 : i32
    %284 = tpu.dynamic_rotate %283 by %c1_i32_65 dim 0 : vector<16x128xf32>, i32 -> vector<16x128xf32>
    %285 = arith.mulf %284, %29 : vector<16x128xf32>
    %286 = arith.addf %272, %285 : vector<16x128xf32>
    %c29 = arith.constant 29 : index
    %287 = memref.load %arg1[%c29] : memref<81xf32, #tpu.memory_space<smem>>
    %288 = vector.broadcast %287 : f32 to vector<16x128xf32>
    %289 = arith.mulf %70, %288 : vector<16x128xf32>
    %c38 = arith.constant 38 : index
    %290 = memref.load %arg1[%c38] : memref<81xf32, #tpu.memory_space<smem>>
    %291 = vector.broadcast %290 : f32 to vector<16x128xf32>
    %292 = arith.mulf %104, %291 : vector<16x128xf32>
    %293 = arith.addf %289, %292 : vector<16x128xf32>
    %c47 = arith.constant 47 : index
    %294 = memref.load %arg1[%c47] : memref<81xf32, #tpu.memory_space<smem>>
    %295 = vector.broadcast %294 : f32 to vector<16x128xf32>
    %296 = arith.mulf %78, %295 : vector<16x128xf32>
    %297 = arith.addf %293, %296 : vector<16x128xf32>
    %c1_i32_66 = arith.constant 1 : i32
    %298 = tpu.dynamic_rotate %297 by %c1_i32_66 dim 0 : vector<16x128xf32>, i32 -> vector<16x128xf32>
    %299 = arith.mulf %298, %29 : vector<16x128xf32>
    %c127_i32_67 = arith.constant 127 : i32
    %300 = tpu.dynamic_rotate %299 by %c127_i32_67 dim 1 : vector<16x128xf32>, i32 -> vector<16x128xf32>
    %301 = vector.broadcast %24 : vector<1x128xf32> to vector<16x128xf32>
    %302 = arith.mulf %300, %301 : vector<16x128xf32>
    %303 = arith.addf %286, %302 : vector<16x128xf32>
    %c30 = arith.constant 30 : index
    %304 = memref.load %arg1[%c30] : memref<81xf32, #tpu.memory_space<smem>>
    %305 = vector.broadcast %304 : f32 to vector<16x128xf32>
    %306 = arith.mulf %70, %305 : vector<16x128xf32>
    %c39 = arith.constant 39 : index
    %307 = memref.load %arg1[%c39] : memref<81xf32, #tpu.memory_space<smem>>
    %308 = vector.broadcast %307 : f32 to vector<16x128xf32>
    %309 = arith.mulf %104, %308 : vector<16x128xf32>
    %310 = arith.addf %306, %309 : vector<16x128xf32>
    %c48 = arith.constant 48 : index
    %311 = memref.load %arg1[%c48] : memref<81xf32, #tpu.memory_space<smem>>
    %312 = vector.broadcast %311 : f32 to vector<16x128xf32>
    %313 = arith.mulf %78, %312 : vector<16x128xf32>
    %314 = arith.addf %310, %313 : vector<16x128xf32>
    %c1_i32_68 = arith.constant 1 : i32
    %315 = tpu.dynamic_rotate %314 by %c1_i32_68 dim 1 : vector<16x128xf32>, i32 -> vector<16x128xf32>
    %316 = vector.broadcast %20 : vector<1x128xf32> to vector<16x128xf32>
    %317 = arith.mulf %315, %316 : vector<16x128xf32>
    %318 = arith.addf %303, %317 : vector<16x128xf32>
    %c31 = arith.constant 31 : index
    %319 = memref.load %arg1[%c31] : memref<81xf32, #tpu.memory_space<smem>>
    %320 = vector.broadcast %319 : f32 to vector<16x128xf32>
    %321 = arith.mulf %70, %320 : vector<16x128xf32>
    %c40 = arith.constant 40 : index
    %322 = memref.load %arg1[%c40] : memref<81xf32, #tpu.memory_space<smem>>
    %323 = vector.broadcast %322 : f32 to vector<16x128xf32>
    %324 = arith.mulf %104, %323 : vector<16x128xf32>
    %325 = arith.addf %321, %324 : vector<16x128xf32>
    %c49 = arith.constant 49 : index
    %326 = memref.load %arg1[%c49] : memref<81xf32, #tpu.memory_space<smem>>
    %327 = vector.broadcast %326 : f32 to vector<16x128xf32>
    %328 = arith.mulf %78, %327 : vector<16x128xf32>
    %329 = arith.addf %325, %328 : vector<16x128xf32>
    %330 = arith.addf %318, %329 : vector<16x128xf32>
    %c32 = arith.constant 32 : index
    %331 = memref.load %arg1[%c32] : memref<81xf32, #tpu.memory_space<smem>>
    %332 = vector.broadcast %331 : f32 to vector<16x128xf32>
    %333 = arith.mulf %70, %332 : vector<16x128xf32>
    %c41 = arith.constant 41 : index
    %334 = memref.load %arg1[%c41] : memref<81xf32, #tpu.memory_space<smem>>
    %335 = vector.broadcast %334 : f32 to vector<16x128xf32>
    %336 = arith.mulf %104, %335 : vector<16x128xf32>
    %337 = arith.addf %333, %336 : vector<16x128xf32>
    %c50 = arith.constant 50 : index
    %338 = memref.load %arg1[%c50] : memref<81xf32, #tpu.memory_space<smem>>
    %339 = vector.broadcast %338 : f32 to vector<16x128xf32>
    %340 = arith.mulf %78, %339 : vector<16x128xf32>
    %341 = arith.addf %337, %340 : vector<16x128xf32>
    %c127_i32_69 = arith.constant 127 : i32
    %342 = tpu.dynamic_rotate %341 by %c127_i32_69 dim 1 : vector<16x128xf32>, i32 -> vector<16x128xf32>
    %343 = vector.broadcast %24 : vector<1x128xf32> to vector<16x128xf32>
    %344 = arith.mulf %342, %343 : vector<16x128xf32>
    %345 = arith.addf %330, %344 : vector<16x128xf32>
    %c33 = arith.constant 33 : index
    %346 = memref.load %arg1[%c33] : memref<81xf32, #tpu.memory_space<smem>>
    %347 = vector.broadcast %346 : f32 to vector<16x128xf32>
    %348 = arith.mulf %70, %347 : vector<16x128xf32>
    %c42 = arith.constant 42 : index
    %349 = memref.load %arg1[%c42] : memref<81xf32, #tpu.memory_space<smem>>
    %350 = vector.broadcast %349 : f32 to vector<16x128xf32>
    %351 = arith.mulf %104, %350 : vector<16x128xf32>
    %352 = arith.addf %348, %351 : vector<16x128xf32>
    %c51 = arith.constant 51 : index
    %353 = memref.load %arg1[%c51] : memref<81xf32, #tpu.memory_space<smem>>
    %354 = vector.broadcast %353 : f32 to vector<16x128xf32>
    %355 = arith.mulf %78, %354 : vector<16x128xf32>
    %356 = arith.addf %352, %355 : vector<16x128xf32>
    %c15_i32_70 = arith.constant 15 : i32
    %357 = tpu.dynamic_rotate %356 by %c15_i32_70 dim 0 : vector<16x128xf32>, i32 -> vector<16x128xf32>
    %358 = arith.mulf %357, %33 : vector<16x128xf32>
    %c1_i32_71 = arith.constant 1 : i32
    %359 = tpu.dynamic_rotate %358 by %c1_i32_71 dim 1 : vector<16x128xf32>, i32 -> vector<16x128xf32>
    %360 = vector.broadcast %20 : vector<1x128xf32> to vector<16x128xf32>
    %361 = arith.mulf %359, %360 : vector<16x128xf32>
    %362 = arith.addf %345, %361 : vector<16x128xf32>
    %c34 = arith.constant 34 : index
    %363 = memref.load %arg1[%c34] : memref<81xf32, #tpu.memory_space<smem>>
    %364 = vector.broadcast %363 : f32 to vector<16x128xf32>
    %365 = arith.mulf %70, %364 : vector<16x128xf32>
    %c43 = arith.constant 43 : index
    %366 = memref.load %arg1[%c43] : memref<81xf32, #tpu.memory_space<smem>>
    %367 = vector.broadcast %366 : f32 to vector<16x128xf32>
    %368 = arith.mulf %104, %367 : vector<16x128xf32>
    %369 = arith.addf %365, %368 : vector<16x128xf32>
    %c52 = arith.constant 52 : index
    %370 = memref.load %arg1[%c52] : memref<81xf32, #tpu.memory_space<smem>>
    %371 = vector.broadcast %370 : f32 to vector<16x128xf32>
    %372 = arith.mulf %78, %371 : vector<16x128xf32>
    %373 = arith.addf %369, %372 : vector<16x128xf32>
    %c15_i32_72 = arith.constant 15 : i32
    %374 = tpu.dynamic_rotate %373 by %c15_i32_72 dim 0 : vector<16x128xf32>, i32 -> vector<16x128xf32>
    %375 = arith.mulf %374, %33 : vector<16x128xf32>
    %376 = arith.addf %362, %375 : vector<16x128xf32>
    %c35 = arith.constant 35 : index
    %377 = memref.load %arg1[%c35] : memref<81xf32, #tpu.memory_space<smem>>
    %378 = vector.broadcast %377 : f32 to vector<16x128xf32>
    %379 = arith.mulf %70, %378 : vector<16x128xf32>
    %c44 = arith.constant 44 : index
    %380 = memref.load %arg1[%c44] : memref<81xf32, #tpu.memory_space<smem>>
    %381 = vector.broadcast %380 : f32 to vector<16x128xf32>
    %382 = arith.mulf %104, %381 : vector<16x128xf32>
    %383 = arith.addf %379, %382 : vector<16x128xf32>
    %c53 = arith.constant 53 : index
    %384 = memref.load %arg1[%c53] : memref<81xf32, #tpu.memory_space<smem>>
    %385 = vector.broadcast %384 : f32 to vector<16x128xf32>
    %386 = arith.mulf %78, %385 : vector<16x128xf32>
    %387 = arith.addf %383, %386 : vector<16x128xf32>
    %c15_i32_73 = arith.constant 15 : i32
    %388 = tpu.dynamic_rotate %387 by %c15_i32_73 dim 0 : vector<16x128xf32>, i32 -> vector<16x128xf32>
    %389 = arith.mulf %388, %33 : vector<16x128xf32>
    %c127_i32_74 = arith.constant 127 : i32
    %390 = tpu.dynamic_rotate %389 by %c127_i32_74 dim 1 : vector<16x128xf32>, i32 -> vector<16x128xf32>
    %391 = vector.broadcast %24 : vector<1x128xf32> to vector<16x128xf32>
    %392 = arith.mulf %390, %391 : vector<16x128xf32>
    %393 = arith.addf %376, %392 : vector<16x128xf32>
    %c1_75 = arith.constant 1 : index
    %394 = memref.load %arg2[%c1_75] : memref<3xf32, #tpu.memory_space<smem>>
    %395 = vector.broadcast %394 : f32 to vector<16x128xf32>
    %396 = arith.mulf %393, %395 : vector<16x128xf32>
    %c1_76 = arith.constant 1 : index
    %397 = memref.load %arg3[%c1_76] : memref<3xf32, #tpu.memory_space<smem>>
    %398 = vector.broadcast %397 : f32 to vector<16x128xf32>
    %399 = arith.addf %396, %398 : vector<16x128xf32>
    %cst_77 = arith.constant -1.000000e+00 : f32
    %cst_78 = arith.constant 1.000000e+00 : f32
    %400 = vector.broadcast %cst_77 : f32 to vector<16x128xf32>
    %401 = arith.maximumf %400, %399 : vector<16x128xf32>
    %402 = vector.broadcast %cst_78 : f32 to vector<16x128xf32>
    %403 = arith.minimumf %402, %401 : vector<16x128xf32>
    %c96_i32_79 = arith.constant 96 : i32
    %404 = tpu.dynamic_rotate %403 by %c96_i32_79 dim 1 : vector<16x128xf32>, i32 -> vector<16x128xf32>
    %405 = arith.subf %403, %404 : vector<16x128xf32>
    %c0_80 = arith.constant 0 : index
    %c1_81 = arith.constant 1 : index
    %c0_82 = arith.constant 0 : index
    %c0_83 = arith.constant 0 : index
    %406 = vector.load %arg5[%c0_80, %c1_81, %c0_82, %c0_83] : memref<1x3x16x128xf32, #tpu.memory_space<vmem>>, vector<1x1x16x128xf32>
    %407 = vector.shape_cast %406 : vector<1x1x16x128xf32> to vector<16x128xf32>
    %408 = vector.shape_cast %405 : vector<16x128xf32> to vector<1x1x16x128xf32>
    tpu.vector_store %arg5[%c0_80, %c1_81, %c0_82, %c0_83], %408 {strides = array<i32>} : memref<1x3x16x128xf32, #tpu.memory_space<vmem>>, vector<1x1x16x128xf32>,
    %c54 = arith.constant 54 : index
    %409 = memref.load %arg1[%c54] : memref<81xf32, #tpu.memory_space<smem>>
    %410 = vector.broadcast %409 : f32 to vector<16x128xf32>
    %411 = arith.mulf %70, %410 : vector<16x128xf32>
    %c63 = arith.constant 63 : index
    %412 = memref.load %arg1[%c63] : memref<81xf32, #tpu.memory_space<smem>>
    %413 = vector.broadcast %412 : f32 to vector<16x128xf32>
    %414 = arith.mulf %104, %413 : vector<16x128xf32>
    %415 = arith.addf %411, %414 : vector<16x128xf32>
    %c72 = arith.constant 72 : index
    %416 = memref.load %arg1[%c72] : memref<81xf32, #tpu.memory_space<smem>>
    %417 = vector.broadcast %416 : f32 to vector<16x128xf32>
    %418 = arith.mulf %78, %417 : vector<16x128xf32>
    %419 = arith.addf %415, %418 : vector<16x128xf32>
    %c1_i32_84 = arith.constant 1 : i32
    %420 = tpu.dynamic_rotate %419 by %c1_i32_84 dim 0 : vector<16x128xf32>, i32 -> vector<16x128xf32>
    %421 = arith.mulf %420, %29 : vector<16x128xf32>
    %c1_i32_85 = arith.constant 1 : i32
    %422 = tpu.dynamic_rotate %421 by %c1_i32_85 dim 1 : vector<16x128xf32>, i32 -> vector<16x128xf32>
    %423 = vector.broadcast %20 : vector<1x128xf32> to vector<16x128xf32>
    %424 = arith.mulf %422, %423 : vector<16x128xf32>
    %c55 = arith.constant 55 : index
    %425 = memref.load %arg1[%c55] : memref<81xf32, #tpu.memory_space<smem>>
    %426 = vector.broadcast %425 : f32 to vector<16x128xf32>
    %427 = arith.mulf %70, %426 : vector<16x128xf32>
    %c64 = arith.constant 64 : index
    %428 = memref.load %arg1[%c64] : memref<81xf32, #tpu.memory_space<smem>>
    %429 = vector.broadcast %428 : f32 to vector<16x128xf32>
    %430 = arith.mulf %104, %429 : vector<16x128xf32>
    %431 = arith.addf %427, %430 : vector<16x128xf32>
    %c73 = arith.constant 73 : index
    %432 = memref.load %arg1[%c73] : memref<81xf32, #tpu.memory_space<smem>>
    %433 = vector.broadcast %432 : f32 to vector<16x128xf32>
    %434 = arith.mulf %78, %433 : vector<16x128xf32>
    %435 = arith.addf %431, %434 : vector<16x128xf32>
    %c1_i32_86 = arith.constant 1 : i32
    %436 = tpu.dynamic_rotate %435 by %c1_i32_86 dim 0 : vector<16x128xf32>, i32 -> vector<16x128xf32>
    %437 = arith.mulf %436, %29 : vector<16x128xf32>
    %438 = arith.addf %424, %437 : vector<16x128xf32>
    %c56 = arith.constant 56 : index
    %439 = memref.load %arg1[%c56] : memref<81xf32, #tpu.memory_space<smem>>
    %440 = vector.broadcast %439 : f32 to vector<16x128xf32>
    %441 = arith.mulf %70, %440 : vector<16x128xf32>
    %c65 = arith.constant 65 : index
    %442 = memref.load %arg1[%c65] : memref<81xf32, #tpu.memory_space<smem>>
    %443 = vector.broadcast %442 : f32 to vector<16x128xf32>
    %444 = arith.mulf %104, %443 : vector<16x128xf32>
    %445 = arith.addf %441, %444 : vector<16x128xf32>
    %c74 = arith.constant 74 : index
    %446 = memref.load %arg1[%c74] : memref<81xf32, #tpu.memory_space<smem>>
    %447 = vector.broadcast %446 : f32 to vector<16x128xf32>
    %448 = arith.mulf %78, %447 : vector<16x128xf32>
    %449 = arith.addf %445, %448 : vector<16x128xf32>
    %c1_i32_87 = arith.constant 1 : i32
    %450 = tpu.dynamic_rotate %449 by %c1_i32_87 dim 0 : vector<16x128xf32>, i32 -> vector<16x128xf32>
    %451 = arith.mulf %450, %29 : vector<16x128xf32>
    %c127_i32_88 = arith.constant 127 : i32
    %452 = tpu.dynamic_rotate %451 by %c127_i32_88 dim 1 : vector<16x128xf32>, i32 -> vector<16x128xf32>
    %453 = vector.broadcast %24 : vector<1x128xf32> to vector<16x128xf32>
    %454 = arith.mulf %452, %453 : vector<16x128xf32>
    %455 = arith.addf %438, %454 : vector<16x128xf32>
    %c57 = arith.constant 57 : index
    %456 = memref.load %arg1[%c57] : memref<81xf32, #tpu.memory_space<smem>>
    %457 = vector.broadcast %456 : f32 to vector<16x128xf32>
    %458 = arith.mulf %70, %457 : vector<16x128xf32>
    %c66 = arith.constant 66 : index
    %459 = memref.load %arg1[%c66] : memref<81xf32, #tpu.memory_space<smem>>
    %460 = vector.broadcast %459 : f32 to vector<16x128xf32>
    %461 = arith.mulf %104, %460 : vector<16x128xf32>
    %462 = arith.addf %458, %461 : vector<16x128xf32>
    %c75 = arith.constant 75 : index
    %463 = memref.load %arg1[%c75] : memref<81xf32, #tpu.memory_space<smem>>
    %464 = vector.broadcast %463 : f32 to vector<16x128xf32>
    %465 = arith.mulf %78, %464 : vector<16x128xf32>
    %466 = arith.addf %462, %465 : vector<16x128xf32>
    %c1_i32_89 = arith.constant 1 : i32
    %467 = tpu.dynamic_rotate %466 by %c1_i32_89 dim 1 : vector<16x128xf32>, i32 -> vector<16x128xf32>
    %468 = vector.broadcast %20 : vector<1x128xf32> to vector<16x128xf32>
    %469 = arith.mulf %467, %468 : vector<16x128xf32>
    %470 = arith.addf %455, %469 : vector<16x128xf32>
    %c58 = arith.constant 58 : index
    %471 = memref.load %arg1[%c58] : memref<81xf32, #tpu.memory_space<smem>>
    %472 = vector.broadcast %471 : f32 to vector<16x128xf32>
    %473 = arith.mulf %70, %472 : vector<16x128xf32>
    %c67 = arith.constant 67 : index
    %474 = memref.load %arg1[%c67] : memref<81xf32, #tpu.memory_space<smem>>
    %475 = vector.broadcast %474 : f32 to vector<16x128xf32>
    %476 = arith.mulf %104, %475 : vector<16x128xf32>
    %477 = arith.addf %473, %476 : vector<16x128xf32>
    %c76 = arith.constant 76 : index
    %478 = memref.load %arg1[%c76] : memref<81xf32, #tpu.memory_space<smem>>
    %479 = vector.broadcast %478 : f32 to vector<16x128xf32>
    %480 = arith.mulf %78, %479 : vector<16x128xf32>
    %481 = arith.addf %477, %480 : vector<16x128xf32>
    %482 = arith.addf %470, %481 : vector<16x128xf32>
    %c59 = arith.constant 59 : index
    %483 = memref.load %arg1[%c59] : memref<81xf32, #tpu.memory_space<smem>>
    %484 = vector.broadcast %483 : f32 to vector<16x128xf32>
    %485 = arith.mulf %70, %484 : vector<16x128xf32>
    %c68 = arith.constant 68 : index
    %486 = memref.load %arg1[%c68] : memref<81xf32, #tpu.memory_space<smem>>
    %487 = vector.broadcast %486 : f32 to vector<16x128xf32>
    %488 = arith.mulf %104, %487 : vector<16x128xf32>
    %489 = arith.addf %485, %488 : vector<16x128xf32>
    %c77 = arith.constant 77 : index
    %490 = memref.load %arg1[%c77] : memref<81xf32, #tpu.memory_space<smem>>
    %491 = vector.broadcast %490 : f32 to vector<16x128xf32>
    %492 = arith.mulf %78, %491 : vector<16x128xf32>
    %493 = arith.addf %489, %492 : vector<16x128xf32>
    %c127_i32_90 = arith.constant 127 : i32
    %494 = tpu.dynamic_rotate %493 by %c127_i32_90 dim 1 : vector<16x128xf32>, i32 -> vector<16x128xf32>
    %495 = vector.broadcast %24 : vector<1x128xf32> to vector<16x128xf32>
    %496 = arith.mulf %494, %495 : vector<16x128xf32>
    %497 = arith.addf %482, %496 : vector<16x128xf32>
    %c60 = arith.constant 60 : index
    %498 = memref.load %arg1[%c60] : memref<81xf32, #tpu.memory_space<smem>>
    %499 = vector.broadcast %498 : f32 to vector<16x128xf32>
    %500 = arith.mulf %70, %499 : vector<16x128xf32>
    %c69 = arith.constant 69 : index
    %501 = memref.load %arg1[%c69] : memref<81xf32, #tpu.memory_space<smem>>
    %502 = vector.broadcast %501 : f32 to vector<16x128xf32>
    %503 = arith.mulf %104, %502 : vector<16x128xf32>
    %504 = arith.addf %500, %503 : vector<16x128xf32>
    %c78 = arith.constant 78 : index
    %505 = memref.load %arg1[%c78] : memref<81xf32, #tpu.memory_space<smem>>
    %506 = vector.broadcast %505 : f32 to vector<16x128xf32>
    %507 = arith.mulf %78, %506 : vector<16x128xf32>
    %508 = arith.addf %504, %507 : vector<16x128xf32>
    %c15_i32_91 = arith.constant 15 : i32
    %509 = tpu.dynamic_rotate %508 by %c15_i32_91 dim 0 : vector<16x128xf32>, i32 -> vector<16x128xf32>
    %510 = arith.mulf %509, %33 : vector<16x128xf32>
    %c1_i32_92 = arith.constant 1 : i32
    %511 = tpu.dynamic_rotate %510 by %c1_i32_92 dim 1 : vector<16x128xf32>, i32 -> vector<16x128xf32>
    %512 = vector.broadcast %20 : vector<1x128xf32> to vector<16x128xf32>
    %513 = arith.mulf %511, %512 : vector<16x128xf32>
    %514 = arith.addf %497, %513 : vector<16x128xf32>
    %c61 = arith.constant 61 : index
    %515 = memref.load %arg1[%c61] : memref<81xf32, #tpu.memory_space<smem>>
    %516 = vector.broadcast %515 : f32 to vector<16x128xf32>
    %517 = arith.mulf %70, %516 : vector<16x128xf32>
    %c70 = arith.constant 70 : index
    %518 = memref.load %arg1[%c70] : memref<81xf32, #tpu.memory_space<smem>>
    %519 = vector.broadcast %518 : f32 to vector<16x128xf32>
    %520 = arith.mulf %104, %519 : vector<16x128xf32>
    %521 = arith.addf %517, %520 : vector<16x128xf32>
    %c79 = arith.constant 79 : index
    %522 = memref.load %arg1[%c79] : memref<81xf32, #tpu.memory_space<smem>>
    %523 = vector.broadcast %522 : f32 to vector<16x128xf32>
    %524 = arith.mulf %78, %523 : vector<16x128xf32>
    %525 = arith.addf %521, %524 : vector<16x128xf32>
    %c15_i32_93 = arith.constant 15 : i32
    %526 = tpu.dynamic_rotate %525 by %c15_i32_93 dim 0 : vector<16x128xf32>, i32 -> vector<16x128xf32>
    %527 = arith.mulf %526, %33 : vector<16x128xf32>
    %528 = arith.addf %514, %527 : vector<16x128xf32>
    %c62 = arith.constant 62 : index
    %529 = memref.load %arg1[%c62] : memref<81xf32, #tpu.memory_space<smem>>
    %530 = vector.broadcast %529 : f32 to vector<16x128xf32>
    %531 = arith.mulf %70, %530 : vector<16x128xf32>
    %c71 = arith.constant 71 : index
    %532 = memref.load %arg1[%c71] : memref<81xf32, #tpu.memory_space<smem>>
    %533 = vector.broadcast %532 : f32 to vector<16x128xf32>
    %534 = arith.mulf %104, %533 : vector<16x128xf32>
    %535 = arith.addf %531, %534 : vector<16x128xf32>
    %c80 = arith.constant 80 : index
    %536 = memref.load %arg1[%c80] : memref<81xf32, #tpu.memory_space<smem>>
    %537 = vector.broadcast %536 : f32 to vector<16x128xf32>
    %538 = arith.mulf %78, %537 : vector<16x128xf32>
    %539 = arith.addf %535, %538 : vector<16x128xf32>
    %c15_i32_94 = arith.constant 15 : i32
    %540 = tpu.dynamic_rotate %539 by %c15_i32_94 dim 0 : vector<16x128xf32>, i32 -> vector<16x128xf32>
    %541 = arith.mulf %540, %33 : vector<16x128xf32>
    %c127_i32_95 = arith.constant 127 : i32
    %542 = tpu.dynamic_rotate %541 by %c127_i32_95 dim 1 : vector<16x128xf32>, i32 -> vector<16x128xf32>
    %543 = vector.broadcast %24 : vector<1x128xf32> to vector<16x128xf32>
    %544 = arith.mulf %542, %543 : vector<16x128xf32>
    %545 = arith.addf %528, %544 : vector<16x128xf32>
    %c2_96 = arith.constant 2 : index
    %546 = memref.load %arg2[%c2_96] : memref<3xf32, #tpu.memory_space<smem>>
    %547 = vector.broadcast %546 : f32 to vector<16x128xf32>
    %548 = arith.mulf %545, %547 : vector<16x128xf32>
    %c2_97 = arith.constant 2 : index
    %549 = memref.load %arg3[%c2_97] : memref<3xf32, #tpu.memory_space<smem>>
    %550 = vector.broadcast %549 : f32 to vector<16x128xf32>
    %551 = arith.addf %548, %550 : vector<16x128xf32>
    %cst_98 = arith.constant -1.000000e+00 : f32
    %cst_99 = arith.constant 1.000000e+00 : f32
    %552 = vector.broadcast %cst_98 : f32 to vector<16x128xf32>
    %553 = arith.maximumf %552, %551 : vector<16x128xf32>
    %554 = vector.broadcast %cst_99 : f32 to vector<16x128xf32>
    %555 = arith.minimumf %554, %553 : vector<16x128xf32>
    %c96_i32_100 = arith.constant 96 : i32
    %556 = tpu.dynamic_rotate %555 by %c96_i32_100 dim 1 : vector<16x128xf32>, i32 -> vector<16x128xf32>
    %557 = arith.subf %555, %556 : vector<16x128xf32>
    %c0_101 = arith.constant 0 : index
    %c2_102 = arith.constant 2 : index
    %c0_103 = arith.constant 0 : index
    %c0_104 = arith.constant 0 : index
    %558 = vector.load %arg5[%c0_101, %c2_102, %c0_103, %c0_104] : memref<1x3x16x128xf32, #tpu.memory_space<vmem>>, vector<1x1x16x128xf32>
    %559 = vector.shape_cast %558 : vector<1x1x16x128xf32> to vector<16x128xf32>
    %560 = vector.shape_cast %557 : vector<16x128xf32> to vector<1x1x16x128xf32>
    tpu.vector_store %arg5[%c0_101, %c2_102, %c0_103, %c0_104], %560 {strides = array<i32>} : memref<1x3x16x128xf32, #tpu.memory_space<vmem>>, vector<1x1x16x128xf32>,
    return
  }
  func.func @transform_0(%arg0: i32) -> i32 {
    %c0_i32 = arith.constant 0 : i32
    %c0_i32_0 = arith.constant 0 : i32
    return %c0_i32 : i32
  }
  func.func @transform_1(%arg0: i32) -> i32 {
    %c0_i32 = arith.constant 0 : i32
    %c0_i32_0 = arith.constant 0 : i32
    return %c0_i32 : i32
  }
  func.func @transform_2(%arg0: i32) -> i32 {
    %c0_i32 = arith.constant 0 : i32
    %c0_i32_0 = arith.constant 0 : i32
    return %c0_i32 : i32
  }
  func.func @transform_3(%arg0: i32) -> (i32, i32, i32, i32) {
    %c0_i32 = arith.constant 0 : i32
    %c0_i32_0 = arith.constant 0 : i32
    %c0_i32_1 = arith.constant 0 : i32
    %c0_i32_2 = arith.constant 0 : i32
    return %arg0, %c0_i32, %c0_i32_0, %c0_i32_1 : i32, i32, i32, i32
  }
  func.func @transform_4(%arg0: i32) -> (i32, i32, i32, i32) {
    %c0_i32 = arith.constant 0 : i32
    %c0_i32_0 = arith.constant 0 : i32
    %c0_i32_1 = arith.constant 0 : i32
    %c0_i32_2 = arith.constant 0 : i32
    return %arg0, %c0_i32, %c0_i32_0, %c0_i32_1 : i32, i32, i32, i32
  }
}

</mosaic_0001>

<llo_original>
// kernel: run.1
$region0: #{run.1}
  #allocation0 [shape = 'u32[]', space=smem, size = 0x4, offset = 0x4, fixed_abs, tag = 'smem constant byte address 0x4 - core index']
  #allocation1 [shape = 'u32[144,128]{1,0:T(1,128)}', space=vmem, size = 0x12000, scoped, tag = 'internal scratch']
  %s0 = inlined_call_operand.vmem [shape: f32[81], index: 0, kind: input, shape index: {}]
  %s1 = inlined_call_operand.vmem [shape: f32[3], index: 1, kind: input, shape index: {}]
  %s2 = inlined_call_operand.vmem [shape: f32[3], index: 2, kind: input, shape index: {}]
  %s3 = inlined_call_operand.vmem [shape: f32[1,4,16,128], index: 3, kind: input, shape index: {}]
  %s4 = inlined_call_operand.vmem [shape: f32[1,3,16,128], index: 4, kind: output, shape index: {}]
  %s5 = sld [smem:[#allocation0]]
  $region38: #{run.1} parent=0
    _
  %s7 = ssub.s32 1, %s5
  %s8 = scalar_select 0, %s7, %s5
  $region1: #{run.1} parent=0
    #allocation2 [shape = 'u8[512]{0}', space=smem, size = 0x200, scoped, tag = 'input window, operand 0, single buffered']
    #allocation3 [shape = 's32[1]{0}', space=sflag, size = 0x4, scoped, tag = 'scoped memory for run.1']
    #allocation4 [shape = 'u8[512]{0}', space=smem, size = 0x200, scoped, tag = 'input window, operand 1, single buffered']
    #allocation5 [shape = 's32[1]{0}', space=sflag, size = 0x4, scoped, tag = 'scoped memory for run.1']
    #allocation6 [shape = 'u8[512]{0}', space=smem, size = 0x200, scoped, tag = 'input window, operand 2, single buffered']
    %9 = vsyncpa [#allocation3], 0
    %10 = vsyncpa [#allocation5], 0
    // Predicated region
    $region2: #{run.1} parent=1 // pred_check
      _
    $region3: #{run.1} parent=1 // pred_check_branch
      %12 = sbr.rel (0) target = $region5
    $region4: #{run.1} parent=1 // pred_region
      %s14 = ssub.s32 16, 16
      %15 = vsyncadd [#allocation3], %s14
      %s17 = sshll.u32 %s0, 4
      %s18 = int_to_ptr.vmem [resolvable:$true] %s17
      %20 = dma.vmem_to_smem %s18, 16, [#allocation2], [#allocation3]
    $region5: #{run.1} parent=1 // pred_fallthru
      _
    // Predicated region
    $region6: #{run.1} parent=1 // pred_check
      _
    $region7: #{run.1} parent=1 // pred_check_branch
      %22 = sbr.rel (0) target = $region9
    $region8: #{run.1} parent=1 // pred_region
      %s24 = ssub.s32 16, 16
      %25 = vsyncadd [#allocation5], %s24
      %s27 = sshll.u32 %s1, 4
      %s28 = int_to_ptr.vmem [resolvable:$true] %s27
      %30 = dma.vmem_to_smem %s28, 16, [#allocation4], [#allocation5]
    $region9: #{run.1} parent=1 // pred_fallthru
      _
    // Predicated region
    $region10: #{run.1} parent=1 // pred_check
      _
    $region11: #{run.1} parent=1 // pred_check_branch
      %32 = sbr.rel (0) target = $region13
    $region12: #{run.1} parent=1 // pred_region
      %s34 = ssub.s32 16, 16
      %35 = vsyncadd [#allocation5], %s34
      %s37 = sshll.u32 %s2, 4
      %s38 = int_to_ptr.vmem [resolvable:$true] %s37
      %40 = dma.vmem_to_smem %s38, 16, [#allocation6], [#allocation5]
    $region13: #{run.1} parent=1 // pred_fallthru
      _
    // Predicated region
    $region14: #{run.1} parent=1 // pred_check
      _
    $region15: #{run.1} parent=1 // pred_check_branch
      %42 = sbr.rel (0) target = $region17
    $region16: #{run.1} parent=1 // pred_region
      _
    $region17: #{run.1} parent=1 // pred_fallthru
      _
    // Predicated region
    $region18: #{run.1} parent=1 // pred_check
      _
    $region19: #{run.1} parent=1 // pred_check_branch
      %44 = sbr.rel (0) target = $region21
    $region20: #{run.1} parent=1 // pred_region
      %45 = dma.done [#allocation3], 16
    $region21: #{run.1} parent=1 // pred_fallthru
      _
    // Predicated region
    $region22: #{run.1} parent=1 // pred_check
      _
    $region23: #{run.1} parent=1 // pred_check_branch
      %47 = sbr.rel (0) target = $region25
    $region24: #{run.1} parent=1 // pred_region
      %48 = dma.done [#allocation5], 16
    $region25: #{run.1} parent=1 // pred_fallthru
      _
    // Predicated region
    $region26: #{run.1} parent=1 // pred_check
      _
    $region27: #{run.1} parent=1 // pred_check_branch
      %50 = sbr.rel (0) target = $region29
    $region28: #{run.1} parent=1 // pred_region
      %51 = dma.done [#allocation5], 16
    $region29: #{run.1} parent=1 // pred_fallthru
      _
    %52 = sfence
    %v53 = vlaneseq
    %v54 = vand.u32 %v53, 127
    %vm55 = vcmp.lt.s32.totalorder %v54, 0
    %v56 = vsub.s32 0, %v54
    %v57 = vsel %vm55, %v56, %v54
    %v58 = vshrl.u32 %v57, 4
    %v59 = vand.u32 %v57, 15
    %v60 = vsub.s32 0, %v59
    %v61 = vsel %vm55, %v60, %v59
    %vm62 = vcmp.ne.s32.totalorder %v61, 0
    %vm63 = vcmp.lt.s32.totalorder %v61, 0
    %vm64 = vmand %vm63, %vm62
    %v65 = vadd.s32 %v61, 16
    %v66 = vsel %vm64, %v65, %v61
    %vm67 = vcmp.ne.s32.totalorder %v66, 0
    %v68 = vsel %vm67, 1, 0
    %v69 = vcvt.s32.f32 %v68
    %vm70 = vcmp.ne.s32.totalorder %v66, 15
    %v71 = vsel %vm70, 1, 0
    %v72 = vcvt.s32.f32 %v71
    %v73 = vlaneseq
    %v74 = vshrl.u32 %v73, 7
    %v75 = vadd.s32 %v74, 8
    %vm76 = vcmp.ne.s32.totalorder %v74, 0
    %vm77 = vcmp.ne.s32.totalorder %v75, 0
    %v78 = vsel %vm76, 1, 0
    %v79 = vsel %vm77, 1, 0
    %v80 = vcvt.s32.f32 %v78
    %v81 = vcvt.s32.f32 %v79
    %vm82 = vcmp.ne.s32.totalorder %v74, 15
    %vm83 = vcmp.ne.s32.totalorder %v75, 15
    %v84 = vsel %vm82, 1, 0
    %v85 = vsel %vm83, 1, 0
    %v86 = vcvt.s32.f32 %v84
    %v87 = vcvt.s32.f32 %v85
    %v88 = vld [vmem:[%s3] sm:$0xff]
    %v89 = vld [vmem:[%s3 + $0x8] sm:$0xff]
    %s90 = scalar_lea.vmem %s3, 16
    %v91 = vld [vmem:[%s90] sm:$0xff]
    %v92 = vld [vmem:[%s90 + $0x8] sm:$0xff]
    %v93 = vadd.f32 %v88, %v91
    %v94 = vadd.f32 %v89, %v92
    %s95 = scalar_lea.vmem %s3, 32
    %v96 = vld [vmem:[%s95] sm:$0xff]
    %v97 = vld [vmem:[%s95 + $0x8] sm:$0xff]
    %v98 = vadd.f32 %v93, %v96
    %v99 = vadd.f32 %v94, %v97
    %s100 = scalar_lea.vmem %s3, 48
    %v101 = vld [vmem:[%s100] sm:$0xff]
    %v102 = vld [vmem:[%s100 + $0x8] sm:$0xff]
    %v103 = vadd.f32 %v98, %v101
    %v104 = vadd.f32 %v99, %v102
    %v105 = vmul.f32 %v103, 0.25
    %v106 = vmul.f32 %v104, 0.25
    %v107 = vrot.slane %v105, 7
    %v108 = vrot.slane %v106, 7
    %vm109 = vcmp.lt.s32.totalorder %v74, 1
    %v110 = vsel %vm109, %v107, %v108
    %v111 = vsel %vm109, %v108, %v107
    %v112 = vmul.f32 %v111, %v80
    %v113 = vmul.f32 %v110, %v81
    %v114 = vmul.f32 %v112, 0.25
    %v115 = vmul.f32 %v113, 0.25
    %116 = vrot.lane.b32.xlu0 %v105, 1
    %v117 = vpop.permute.xlu0 %116
    %118 = vrot.lane.b32.xlu0 %v106, 1
    %v119 = vpop.permute.xlu0 %118
    %v120 = vmul.f32 %v117, %v69
    %v121 = vmul.f32 %v119, %v69
    %v122 = vmul.f32 %v120, 0.5
    %v123 = vmul.f32 %v121, 0.5
    %v124 = vmul.f32 %v120, 0.25
    %v125 = vmul.f32 %v121, 0.25
    %v126 = vadd.f32 %v114, %v124
    %v127 = vadd.f32 %v115, %v125
    %v128 = vmul.f32 %v105, -1.0
    %v129 = vmul.f32 %v106, -1.0
    %v130 = vadd.f32 %v122, %v128
    %v131 = vadd.f32 %v123, %v129
    %v132 = vadd.f32 %v126, %v128
    %v133 = vadd.f32 %v127, %v129
    %134 = vrot.lane.b32.xlu0 %v105, 127
    %v135 = vpop.permute.xlu0 %134
    %136 = vrot.lane.b32.xlu0 %v106, 127
    %v137 = vpop.permute.xlu0 %136
    %v138 = vmul.f32 %v135, %v72
    %v139 = vmul.f32 %v137, %v72
    %v140 = vmul.f32 %v138, 0.5
    %v141 = vmul.f32 %v139, 0.5
    %v142 = vadd.f32 %v130, %v140
    %v143 = vadd.f32 %v131, %v141
    %v144 = vmul.f32 %v138, 0.25
    %v145 = vmul.f32 %v139, 0.25
    %v146 = vadd.f32 %v132, %v144
    %v147 = vadd.f32 %v133, %v145
    %v148 = vrot.slane %v105, 1
    %v149 = vrot.slane %v106, 1
    %vm150 = vcmp.lt.s32.totalorder %v74, 7
    %v151 = vsel %vm150, %v148, %v149
    %v152 = vsel %vm150, %v149, %v148
    %v153 = vmul.f32 %v151, %v86
    %v154 = vmul.f32 %v152, %v87
    %v155 = vmul.f32 %v153, 0.25
    %v156 = vmul.f32 %v154, 0.25
    %v157 = vadd.f32 %v146, %v155
    %v158 = vadd.f32 %v147, %v156
    %v159 = vmul.f32 %v120, -0.4082483
    %v160 = vmul.f32 %v121, -0.4082483
    %v161 = vmul.f32 %v105, 0.8164966
    %v162 = vmul.f32 %v106, 0.8164966
    %v163 = vadd.f32 %v159, %v161
    %v164 = vadd.f32 %v160, %v162
    %v165 = vmul.f32 %v138, -0.4082483
    %v166 = vmul.f32 %v139, -0.4082483
    %v167 = vadd.f32 %v163, %v165
    %v168 = vadd.f32 %v164, %v166
    %v169 = vrot.slane %v167, 7
    %v170 = vrot.slane %v168, 7
    %v171 = vsel %vm109, %v169, %v170
    %v172 = vsel %vm109, %v170, %v169
    %v173 = vmul.f32 %v172, %v80
    %v174 = vmul.f32 %v171, %v81
    %v175 = vmul.f32 %v173, -0.61237246
    %v176 = vmul.f32 %v174, -0.61237246
    %v177 = vmul.f32 %v167, 1.2247449
    %v178 = vmul.f32 %v168, 1.2247449
    %v179 = vadd.f32 %v175, %v177
    %v180 = vadd.f32 %v176, %v178
    %v181 = vrot.slane %v167, 1
    %v182 = vrot.slane %v168, 1
    %v183 = vsel %vm150, %v181, %v182
    %v184 = vsel %vm150, %v182, %v181
    %v185 = vmul.f32 %v183, %v86
    %v186 = vmul.f32 %v184, %v87
    %v187 = vmul.f32 %v185, -0.61237246
    %v188 = vmul.f32 %v186, -0.61237246
    %v189 = vadd.f32 %v179, %v187
    %v190 = vadd.f32 %v180, %v188
    %s191 = sld [smem:[#allocation2]]
    %v192 = vstv %s191
    %v193 = vmul.f32 %v142, %v192
    %v194 = vmul.f32 %v143, %v192
    %s195 = sld [smem:[#allocation2 + $0x9]]
    %v196 = vstv %s195
    %v197 = vmul.f32 %v189, %v196
    %v198 = vmul.f32 %v190, %v196
    %v199 = vadd.f32 %v193, %v197
    %v200 = vadd.f32 %v194, %v198
    %s201 = sld [smem:[#allocation2 + $0x12]]
    %v202 = vstv %s201
    %v203 = vmul.f32 %v157, %v202
    %v204 = vmul.f32 %v158, %v202
    %v205 = vadd.f32 %v199, %v203
    %v206 = vadd.f32 %v200, %v204
    %v207 = vrot.slane %v205, 7
    %v208 = vrot.slane %v206, 7
    %v209 = vsel %vm109, %v207, %v208
    %v210 = vsel %vm109, %v208, %v207
    %v211 = vmul.f32 %v210, %v80
    %v212 = vmul.f32 %v209, %v81
    %213 = vrot.lane.b32.xlu0 %v211, 1
    %v214 = vpop.permute.xlu0 %213
    %215 = vrot.lane.b32.xlu0 %v212, 1
    %v216 = vpop.permute.xlu0 %215
    %v217 = vmul.f32 %v214, %v69
    %v218 = vmul.f32 %v216, %v69
    %s219 = sld [smem:[#allocation2 + $0x1]]
    %v220 = vstv %s219
    %v221 = vmul.f32 %v142, %v220
    %v222 = vmul.f32 %v143, %v220
    %s223 = sld [smem:[#allocation2 + $0xa]]
    %v224 = vstv %s223
    %v225 = vmul.f32 %v189, %v224
    %v226 = vmul.f32 %v190, %v224
    %v227 = vadd.f32 %v221, %v225
    %v228 = vadd.f32 %v222, %v226
    %s229 = sld [smem:[#allocation2 + $0x13]]
    %v230 = vstv %s229
    %v231 = vmul.f32 %v157, %v230
    %v232 = vmul.f32 %v158, %v230
    %v233 = vadd.f32 %v227, %v231
    %v234 = vadd.f32 %v228, %v232
    %v235 = vrot.slane %v233, 7
    %v236 = vrot.slane %v234, 7
    %v237 = vsel %vm109, %v235, %v236
    %v238 = vsel %vm109, %v236, %v235
    %v239 = vmul.f32 %v238, %v80
    %v240 = vmul.f32 %v237, %v81
    %v241 = vadd.f32 %v217, %v239
    %v242 = vadd.f32 %v218, %v240
    %s243 = sld [smem:[#allocation2 + $0x2]]
    %v244 = vstv %s243
    %v245 = vmul.f32 %v142, %v244
    %v246 = vmul.f32 %v143, %v244
    %s247 = sld [smem:[#allocation2 + $0xb]]
    %v248 = vstv %s247
    %v249 = vmul.f32 %v189, %v248
    %v250 = vmul.f32 %v190, %v248
    %v251 = vadd.f32 %v245, %v249
    %v252 = vadd.f32 %v246, %v250
    %s253 = sld [smem:[#allocation2 + $0x14]]
    %v254 = vstv %s253
    %v255 = vmul.f32 %v157, %v254
    %v256 = vmul.f32 %v158, %v254
    %v257 = vadd.f32 %v251, %v255
    %v258 = vadd.f32 %v252, %v256
    %v259 = vrot.slane %v257, 7
    %v260 = vrot.slane %v258, 7
    %v261 = vsel %vm109, %v259, %v260
    %v262 = vsel %vm109, %v260, %v259
    %v263 = vmul.f32 %v262, %v80
    %v264 = vmul.f32 %v261, %v81
    %265 = vrot.lane.b32.xlu0 %v263, 127
    %v266 = vpop.permute.xlu0 %265
    %267 = vrot.lane.b32.xlu0 %v264, 127
    %v268 = vpop.permute.xlu0 %267
    %v269 = vmul.f32 %v266, %v72
    %v270 = vmul.f32 %v268, %v72
    %v271 = vadd.f32 %v241, %v269
    %v272 = vadd.f32 %v242, %v270
    %s273 = sld [smem:[#allocation2 + $0x3]]
    %v274 = vstv %s273
    %v275 = vmul.f32 %v142, %v274
    %v276 = vmul.f32 %v143, %v274
    %s277 = sld [smem:[#allocation2 + $0xc]]
    %v278 = vstv %s277
    %v279 = vmul.f32 %v189, %v278
    %v280 = vmul.f32 %v190, %v278
    %v281 = vadd.f32 %v275, %v279
    %v282 = vadd.f32 %v276, %v280
    %s283 = sld [smem:[#allocation2 + $0x15]]
    %v284 = vstv %s283
    %v285 = vmul.f32 %v157, %v284
    %v286 = vmul.f32 %v158, %v284
    %v287 = vadd.f32 %v281, %v285
    %v288 = vadd.f32 %v282, %v286
    %289 = vrot.lane.b32.xlu0 %v287, 1
    %v290 = vpop.permute.xlu0 %289
    %291 = vrot.lane.b32.xlu0 %v288, 1
    %v292 = vpop.permute.xlu0 %291
    %v293 = vmul.f32 %v290, %v69
    %v294 = vmul.f32 %v292, %v69
    %v295 = vadd.f32 %v271, %v293
    %v296 = vadd.f32 %v272, %v294
    %s297 = sld [smem:[#allocation2 + $0x4]]
    %v298 = vstv %s297
    %v299 = vmul.f32 %v142, %v298
    %v300 = vmul.f32 %v143, %v298
    %s301 = sld [smem:[#allocation2 + $0xd]]
    %v302 = vstv %s301
    %v303 = vmul.f32 %v189, %v302
    %v304 = vmul.f32 %v190, %v302
    %v305 = vadd.f32 %v299, %v303
    %v306 = vadd.f32 %v300, %v304
    %s307 = sld [smem:[#allocation2 + $0x16]]
    %v308 = vstv %s307
    %v309 = vmul.f32 %v157, %v308
    %v310 = vmul.f32 %v158, %v308
    %v311 = vadd.f32 %v305, %v309
    %v312 = vadd.f32 %v306, %v310
    %v313 = vadd.f32 %v295, %v311
    %v314 = vadd.f32 %v296, %v312
    %s315 = sld [smem:[#allocation2 + $0x5]]
    %v316 = vstv %s315
    %v317 = vmul.f32 %v142, %v316
    %v318 = vmul.f32 %v143, %v316
    %s319 = sld [smem:[#allocation2 + $0xe]]
    %v320 = vstv %s319
    %v321 = vmul.f32 %v189, %v320
    %v322 = vmul.f32 %v190, %v320
    %v323 = vadd.f32 %v317, %v321
    %v324 = vadd.f32 %v318, %v322
    %s325 = sld [smem:[#allocation2 + $0x17]]
    %v326 = vstv %s325
    %v327 = vmul.f32 %v157, %v326
    %v328 = vmul.f32 %v158, %v326
    %v329 = vadd.f32 %v323, %v327
    %v330 = vadd.f32 %v324, %v328
    %331 = vrot.lane.b32.xlu0 %v329, 127
    %v332 = vpop.permute.xlu0 %331
    %333 = vrot.lane.b32.xlu0 %v330, 127
    %v334 = vpop.permute.xlu0 %333
    %v335 = vmul.f32 %v332, %v72
    %v336 = vmul.f32 %v334, %v72
    %v337 = vadd.f32 %v313, %v335
    %v338 = vadd.f32 %v314, %v336
    %s339 = sld [smem:[#allocation2 + $0x6]]
    %v340 = vstv %s339
    %v341 = vmul.f32 %v142, %v340
    %v342 = vmul.f32 %v143, %v340
    %s343 = sld [smem:[#allocation2 + $0xf]]
    %v344 = vstv %s343
    %v345 = vmul.f32 %v189, %v344
    %v346 = vmul.f32 %v190, %v344
    %v347 = vadd.f32 %v341, %v345
    %v348 = vadd.f32 %v342, %v346
    %s349 = sld [smem:[#allocation2 + $0x18]]
    %v350 = vstv %s349
    %v351 = vmul.f32 %v157, %v350
    %v352 = vmul.f32 %v158, %v350
    %v353 = vadd.f32 %v347, %v351
    %v354 = vadd.f32 %v348, %v352
    %v355 = vrot.slane %v353, 1
    %v356 = vrot.slane %v354, 1
    %v357 = vsel %vm150, %v355, %v356
    %v358 = vsel %vm150, %v356, %v355
    %v359 = vmul.f32 %v357, %v86
    %v360 = vmul.f32 %v358, %v87
    %361 = vrot.lane.b32.xlu0 %v359, 1
    %v362 = vpop.permute.xlu0 %361
    %363 = vrot.lane.b32.xlu0 %v360, 1
    %v364 = vpop.permute.xlu0 %363
    %v365 = vmul.f32 %v362, %v69
    %v366 = vmul.f32 %v364, %v69
    %v367 = vadd.f32 %v337, %v365
    %v368 = vadd.f32 %v338, %v366
    %s369 = sld [smem:[#allocation2 + $0x7]]
    %v370 = vstv %s369
    %v371 = vmul.f32 %v142, %v370
    %v372 = vmul.f32 %v143, %v370
    %s373 = sld [smem:[#allocation2 + $0x10]]
    %v374 = vstv %s373
    %v375 = vmul.f32 %v189, %v374
    %v376 = vmul.f32 %v190, %v374
    %v377 = vadd.f32 %v371, %v375
    %v378 = vadd.f32 %v372, %v376
    %s379 = sld [smem:[#allocation2 + $0x19]]
    %v380 = vstv %s379
    %v381 = vmul.f32 %v157, %v380
    %v382 = vmul.f32 %v158, %v380
    %v383 = vadd.f32 %v377, %v381
    %v384 = vadd.f32 %v378, %v382
    %v385 = vrot.slane %v383, 1
    %v386 = vrot.slane %v384, 1
    %v387 = vsel %vm150, %v385, %v386
    %v388 = vsel %vm150, %v386, %v385
    %v389 = vmul.f32 %v387, %v86
    %v390 = vmul.f32 %v388, %v87
    %v391 = vadd.f32 %v367, %v389
    %v392 = vadd.f32 %v368, %v390
    %s393 = sld [smem:[#allocation2 + $0x8]]
    %v394 = vstv %s393
    %v395 = vmul.f32 %v142, %v394
    %v396 = vmul.f32 %v143, %v394
    %s397 = sld [smem:[#allocation2 + $0x11]]
    %v398 = vstv %s397
    %v399 = vmul.f32 %v189, %v398
    %v400 = vmul.f32 %v190, %v398
    %v401 = vadd.f32 %v395, %v399
    %v402 = vadd.f32 %v396, %v400
    %s403 = sld [smem:[#allocation2 + $0x1a]]
    %v404 = vstv %s403
    %v405 = vmul.f32 %v157, %v404
    %v406 = vmul.f32 %v158, %v404
    %v407 = vadd.f32 %v401, %v405
    %v408 = vadd.f32 %v402, %v406
    %v409 = vrot.slane %v407, 1
    %v410 = vrot.slane %v408, 1
    %v411 = vsel %vm150, %v409, %v410
    %v412 = vsel %vm150, %v410, %v409
    %v413 = vmul.f32 %v411, %v86
    %v414 = vmul.f32 %v412, %v87
    %415 = vrot.lane.b32.xlu0 %v413, 127
    %v416 = vpop.permute.xlu0 %415
    %417 = vrot.lane.b32.xlu0 %v414, 127
    %v418 = vpop.permute.xlu0 %417
    %v419 = vmul.f32 %v416, %v72
    %v420 = vmul.f32 %v418, %v72
    %v421 = vadd.f32 %v391, %v419
    %v422 = vadd.f32 %v392, %v420
    %s423 = sld [smem:[#allocation4]]
    %v424 = vstv %s423
    %v425 = vmul.f32 %v421, %v424
    %v426 = vmul.f32 %v422, %v424
    %s427 = sld [smem:[#allocation6]]
    %v428 = vstv %s427
    %v429 = vadd.f32 %v425, %v428
    %v430 = vadd.f32 %v426, %v428
    %v431 = vmax.f32 %v429, -1.0
    %v432 = vmax.f32 %v430, -1.0
    %v433 = vmin.f32 %v431, 1.0
    %v434 = vmin.f32 %v432, 1.0
    %435 = vrot.lane.b32.xlu0 %v433, 96
    %v436 = vpop.permute.xlu0 %435
    %437 = vrot.lane.b32.xlu0 %v434, 96
    %v438 = vpop.permute.xlu0 %437
    %v439 = vsub.f32 %v433, %v436
    %v440 = vsub.f32 %v434, %v438
    %441 = vst [vmem:[%s4] sm:$0xff] %v439
    %442 = vst [vmem:[%s4 + $0x8] sm:$0xff] %v440
    %s443 = sld [smem:[#allocation2 + $0x1b]]
    %v444 = vstv %s443
    %v445 = vmul.f32 %v142, %v444
    %v446 = vmul.f32 %v143, %v444
    %s447 = sld [smem:[#allocation2 + $0x24]]
    %v448 = vstv %s447
    %v449 = vmul.f32 %v189, %v448
    %v450 = vmul.f32 %v190, %v448
    %v451 = vadd.f32 %v445, %v449
    %v452 = vadd.f32 %v446, %v450
    %s453 = sld [smem:[#allocation2 + $0x2d]]
    %v454 = vstv %s453
    %v455 = vmul.f32 %v157, %v454
    %v456 = vmul.f32 %v158, %v454
    %v457 = vadd.f32 %v451, %v455
    %v458 = vadd.f32 %v452, %v456
    %v459 = vrot.slane %v457, 7
    %v460 = vrot.slane %v458, 7
    %v461 = vsel %vm109, %v459, %v460
    %v462 = vsel %vm109, %v460, %v459
    %v463 = vmul.f32 %v462, %v80
    %v464 = vmul.f32 %v461, %v81
    %465 = vrot.lane.b32.xlu0 %v463, 1
    %v466 = vpop.permute.xlu0 %465
    %467 = vrot.lane.b32.xlu0 %v464, 1
    %v468 = vpop.permute.xlu0 %467
    %v469 = vmul.f32 %v466, %v69
    %v470 = vmul.f32 %v468, %v69
    %s471 = sld [smem:[#allocation2 + $0x1c]]
    %v472 = vstv %s471
    %v473 = vmul.f32 %v142, %v472
    %v474 = vmul.f32 %v143, %v472
    %s475 = sld [smem:[#allocation2 + $0x25]]
    %v476 = vstv %s475
    %v477 = vmul.f32 %v189, %v476
    %v478 = vmul.f32 %v190, %v476
    %v479 = vadd.f32 %v473, %v477
    %v480 = vadd.f32 %v474, %v478
    %s481 = sld [smem:[#allocation2 + $0x2e]]
    %v482 = vstv %s481
    %v483 = vmul.f32 %v157, %v482
    %v484 = vmul.f32 %v158, %v482
    %v485 = vadd.f32 %v479, %v483
    %v486 = vadd.f32 %v480, %v484
    %v487 = vrot.slane %v485, 7
    %v488 = vrot.slane %v486, 7
    %v489 = vsel %vm109, %v487, %v488
    %v490 = vsel %vm109, %v488, %v487
    %v491 = vmul.f32 %v490, %v80
    %v492 = vmul.f32 %v489, %v81
    %v493 = vadd.f32 %v469, %v491
    %v494 = vadd.f32 %v470, %v492
    %s495 = sld [smem:[#allocation2 + $0x1d]]
    %v496 = vstv %s495
    %v497 = vmul.f32 %v142, %v496
    %v498 = vmul.f32 %v143, %v496
    %s499 = sld [smem:[#allocation2 + $0x26]]
    %v500 = vstv %s499
    %v501 = vmul.f32 %v189, %v500
    %v502 = vmul.f32 %v190, %v500
    %v503 = vadd.f32 %v497, %v501
    %v504 = vadd.f32 %v498, %v502
    %s505 = sld [smem:[#allocation2 + $0x2f]]
    %v506 = vstv %s505
    %v507 = vmul.f32 %v157, %v506
    %v508 = vmul.f32 %v158, %v506
    %v509 = vadd.f32 %v503, %v507
    %v510 = vadd.f32 %v504, %v508
    %v511 = vrot.slane %v509, 7
    %v512 = vrot.slane %v510, 7
    %v513 = vsel %vm109, %v511, %v512
    %v514 = vsel %vm109, %v512, %v511
    %v515 = vmul.f32 %v514, %v80
    %v516 = vmul.f32 %v513, %v81
    %517 = vrot.lane.b32.xlu0 %v515, 127
    %v518 = vpop.permute.xlu0 %517
    %519 = vrot.lane.b32.xlu0 %v516, 127
    %v520 = vpop.permute.xlu0 %519
    %v521 = vmul.f32 %v518, %v72
    %v522 = vmul.f32 %v520, %v72
    %v523 = vadd.f32 %v493, %v521
    %v524 = vadd.f32 %v494, %v522
    %s525 = sld [smem:[#allocation2 + $0x1e]]
    %v526 = vstv %s525
    %v527 = vmul.f32 %v142, %v526
    %v528 = vmul.f32 %v143, %v526
    %s529 = sld [smem:[#allocation2 + $0x27]]
    %v530 = vstv %s529
    %v531 = vmul.f32 %v189, %v530
    %v532 = vmul.f32 %v190, %v530
    %v533 = vadd.f32 %v527, %v531
    %v534 = vadd.f32 %v528, %v532
    %s535 = sld [smem:[#allocation2 + $0x30]]
    %v536 = vstv %s535
    %v537 = vmul.f32 %v157, %v536
    %v538 = vmul.f32 %v158, %v536
    %v539 = vadd.f32 %v533, %v537
    %v540 = vadd.f32 %v534, %v538
    %541 = vrot.lane.b32.xlu0 %v539, 1
    %v542 = vpop.permute.xlu0 %541
    %543 = vrot.lane.b32.xlu0 %v540, 1
    %v544 = vpop.permute.xlu0 %543
    %v545 = vmul.f32 %v542, %v69
    %v546 = vmul.f32 %v544, %v69
    %v547 = vadd.f32 %v523, %v545
    %v548 = vadd.f32 %v524, %v546
    %s549 = sld [smem:[#allocation2 + $0x1f]]
    %v550 = vstv %s549
    %v551 = vmul.f32 %v142, %v550
    %v552 = vmul.f32 %v143, %v550
    %s553 = sld [smem:[#allocation2 + $0x28]]
    %v554 = vstv %s553
    %v555 = vmul.f32 %v189, %v554
    %v556 = vmul.f32 %v190, %v554
    %v557 = vadd.f32 %v551, %v555
    %v558 = vadd.f32 %v552, %v556
    %s559 = sld [smem:[#allocation2 + $0x31]]
    %v560 = vstv %s559
    %v561 = vmul.f32 %v157, %v560
    %v562 = vmul.f32 %v158, %v560
    %v563 = vadd.f32 %v557, %v561
    %v564 = vadd.f32 %v558, %v562
    %v565 = vadd.f32 %v547, %v563
    %v566 = vadd.f32 %v548, %v564
    %s567 = sld [smem:[#allocation2 + $0x20]]
    %v568 = vstv %s567
    %v569 = vmul.f32 %v142, %v568
    %v570 = vmul.f32 %v143, %v568
    %s571 = sld [smem:[#allocation2 + $0x29]]
    %v572 = vstv %s571
    %v573 = vmul.f32 %v189, %v572
    %v574 = vmul.f32 %v190, %v572
    %v575 = vadd.f32 %v569, %v573
    %v576 = vadd.f32 %v570, %v574
    %s577 = sld [smem:[#allocation2 + $0x32]]
    %v578 = vstv %s577
    %v579 = vmul.f32 %v157, %v578
    %v580 = vmul.f32 %v158, %v578
    %v581 = vadd.f32 %v575, %v579
    %v582 = vadd.f32 %v576, %v580
    %583 = vrot.lane.b32.xlu0 %v581, 127
    %v584 = vpop.permute.xlu0 %583
    %585 = vrot.lane.b32.xlu0 %v582, 127
    %v586 = vpop.permute.xlu0 %585
    %v587 = vmul.f32 %v584, %v72
    %v588 = vmul.f32 %v586, %v72
    %v589 = vadd.f32 %v565, %v587
    %v590 = vadd.f32 %v566, %v588
    %s591 = sld [smem:[#allocation2 + $0x21]]
    %v592 = vstv %s591
    %v593 = vmul.f32 %v142, %v592
    %v594 = vmul.f32 %v143, %v592
    %s595 = sld [smem:[#allocation2 + $0x2a]]
    %v596 = vstv %s595
    %v597 = vmul.f32 %v189, %v596
    %v598 = vmul.f32 %v190, %v596
    %v599 = vadd.f32 %v593, %v597
    %v600 = vadd.f32 %v594, %v598
    %s601 = sld [smem:[#allocation2 + $0x33]]
    %v602 = vstv %s601
    %v603 = vmul.f32 %v157, %v602
    %v604 = vmul.f32 %v158, %v602
    %v605 = vadd.f32 %v599, %v603
    %v606 = vadd.f32 %v600, %v604
    %v607 = vrot.slane %v605, 1
    %v608 = vrot.slane %v606, 1
    %v609 = vsel %vm150, %v607, %v608
    %v610 = vsel %vm150, %v608, %v607
    %v611 = vmul.f32 %v609, %v86
    %v612 = vmul.f32 %v610, %v87
    %613 = vrot.lane.b32.xlu0 %v611, 1
    %v614 = vpop.permute.xlu0 %613
    %615 = vrot.lane.b32.xlu0 %v612, 1
    %v616 = vpop.permute.xlu0 %615
    %v617 = vmul.f32 %v614, %v69
    %v618 = vmul.f32 %v616, %v69
    %v619 = vadd.f32 %v589, %v617
    %v620 = vadd.f32 %v590, %v618
    %s621 = sld [smem:[#allocation2 + $0x22]]
    %v622 = vstv %s621
    %v623 = vmul.f32 %v142, %v622
    %v624 = vmul.f32 %v143, %v622
    %s625 = sld [smem:[#allocation2 + $0x2b]]
    %v626 = vstv %s625
    %v627 = vmul.f32 %v189, %v626
    %v628 = vmul.f32 %v190, %v626
    %v629 = vadd.f32 %v623, %v627
    %v630 = vadd.f32 %v624, %v628
    %s631 = sld [smem:[#allocation2 + $0x34]]
    %v632 = vstv %s631
    %v633 = vmul.f32 %v157, %v632
    %v634 = vmul.f32 %v158, %v632
    %v635 = vadd.f32 %v629, %v633
    %v636 = vadd.f32 %v630, %v634
    %v637 = vrot.slane %v635, 1
    %v638 = vrot.slane %v636, 1
    %v639 = vsel %vm150, %v637, %v638
    %v640 = vsel %vm150, %v638, %v637
    %v641 = vmul.f32 %v639, %v86
    %v642 = vmul.f32 %v640, %v87
    %v643 = vadd.f32 %v619, %v641
    %v644 = vadd.f32 %v620, %v642
    %s645 = sld [smem:[#allocation2 + $0x23]]
    %v646 = vstv %s645
    %v647 = vmul.f32 %v142, %v646
    %v648 = vmul.f32 %v143, %v646
    %s649 = sld [smem:[#allocation2 + $0x2c]]
    %v650 = vstv %s649
    %v651 = vmul.f32 %v189, %v650
    %v652 = vmul.f32 %v190, %v650
    %v653 = vadd.f32 %v647, %v651
    %v654 = vadd.f32 %v648, %v652
    %s655 = sld [smem:[#allocation2 + $0x35]]
    %v656 = vstv %s655
    %v657 = vmul.f32 %v157, %v656
    %v658 = vmul.f32 %v158, %v656
    %v659 = vadd.f32 %v653, %v657
    %v660 = vadd.f32 %v654, %v658
    %v661 = vrot.slane %v659, 1
    %v662 = vrot.slane %v660, 1
    %v663 = vsel %vm150, %v661, %v662
    %v664 = vsel %vm150, %v662, %v661
    %v665 = vmul.f32 %v663, %v86
    %v666 = vmul.f32 %v664, %v87
    %667 = vrot.lane.b32.xlu0 %v665, 127
    %v668 = vpop.permute.xlu0 %667
    %669 = vrot.lane.b32.xlu0 %v666, 127
    %v670 = vpop.permute.xlu0 %669
    %v671 = vmul.f32 %v668, %v72
    %v672 = vmul.f32 %v670, %v72
    %v673 = vadd.f32 %v643, %v671
    %v674 = vadd.f32 %v644, %v672
    %s675 = sld [smem:[#allocation4 + $0x1]]
    %v676 = vstv %s675
    %v677 = vmul.f32 %v673, %v676
    %v678 = vmul.f32 %v674, %v676
    %s679 = sld [smem:[#allocation6 + $0x1]]
    %v680 = vstv %s679
    %v681 = vadd.f32 %v677, %v680
    %v682 = vadd.f32 %v678, %v680
    %v683 = vmax.f32 %v681, -1.0
    %v684 = vmax.f32 %v682, -1.0
    %v685 = vmin.f32 %v683, 1.0
    %v686 = vmin.f32 %v684, 1.0
    %687 = vrot.lane.b32.xlu0 %v685, 96
    %v688 = vpop.permute.xlu0 %687
    %689 = vrot.lane.b32.xlu0 %v686, 96
    %v690 = vpop.permute.xlu0 %689
    %v691 = vsub.f32 %v685, %v688
    %v692 = vsub.f32 %v686, %v690
    %s693 = scalar_lea.vmem %s4, 16
    %694 = vst [vmem:[%s693] sm:$0xff] %v691
    %695 = vst [vmem:[%s693 + $0x8] sm:$0xff] %v692
    %s696 = sld [smem:[#allocation2 + $0x36]]
    %v697 = vstv %s696
    %v698 = vmul.f32 %v142, %v697
    %v699 = vmul.f32 %v143, %v697
    %s700 = sld [smem:[#allocation2 + $0x3f]]
    %v701 = vstv %s700
    %v702 = vmul.f32 %v189, %v701
    %v703 = vmul.f32 %v190, %v701
    %v704 = vadd.f32 %v698, %v702
    %v705 = vadd.f32 %v699, %v703
    %s706 = sld [smem:[#allocation2 + $0x48]]
    %v707 = vstv %s706
    %v708 = vmul.f32 %v157, %v707
    %v709 = vmul.f32 %v158, %v707
    %v710 = vadd.f32 %v704, %v708
    %v711 = vadd.f32 %v705, %v709
    %v712 = vrot.slane %v710, 7
    %v713 = vrot.slane %v711, 7
    %v714 = vsel %vm109, %v712, %v713
    %v715 = vsel %vm109, %v713, %v712
    %v716 = vmul.f32 %v715, %v80
    %v717 = vmul.f32 %v714, %v81
    %718 = vrot.lane.b32.xlu0 %v716, 1
    %v719 = vpop.permute.xlu0 %718
    %720 = vrot.lane.b32.xlu0 %v717, 1
    %v721 = vpop.permute.xlu0 %720
    %v722 = vmul.f32 %v719, %v69
    %v723 = vmul.f32 %v721, %v69
    %s724 = sld [smem:[#allocation2 + $0x37]]
    %v725 = vstv %s724
    %v726 = vmul.f32 %v142, %v725
    %v727 = vmul.f32 %v143, %v725
    %s728 = sld [smem:[#allocation2 + $0x40]]
    %v729 = vstv %s728
    %v730 = vmul.f32 %v189, %v729
    %v731 = vmul.f32 %v190, %v729
    %v732 = vadd.f32 %v726, %v730
    %v733 = vadd.f32 %v727, %v731
    %s734 = sld [smem:[#allocation2 + $0x49]]
    %v735 = vstv %s734
    %v736 = vmul.f32 %v157, %v735
    %v737 = vmul.f32 %v158, %v735
    %v738 = vadd.f32 %v732, %v736
    %v739 = vadd.f32 %v733, %v737
    %v740 = vrot.slane %v738, 7
    %v741 = vrot.slane %v739, 7
    %v742 = vsel %vm109, %v740, %v741
    %v743 = vsel %vm109, %v741, %v740
    %v744 = vmul.f32 %v743, %v80
    %v745 = vmul.f32 %v742, %v81
    %v746 = vadd.f32 %v722, %v744
    %v747 = vadd.f32 %v723, %v745
    %s748 = sld [smem:[#allocation2 + $0x38]]
    %v749 = vstv %s748
    %v750 = vmul.f32 %v142, %v749
    %v751 = vmul.f32 %v143, %v749
    %s752 = sld [smem:[#allocation2 + $0x41]]
    %v753 = vstv %s752
    %v754 = vmul.f32 %v189, %v753
    %v755 = vmul.f32 %v190, %v753
    %v756 = vadd.f32 %v750, %v754
    %v757 = vadd.f32 %v751, %v755
    %s758 = sld [smem:[#allocation2 + $0x4a]]
    %v759 = vstv %s758
    %v760 = vmul.f32 %v157, %v759
    %v761 = vmul.f32 %v158, %v759
    %v762 = vadd.f32 %v756, %v760
    %v763 = vadd.f32 %v757, %v761
    %v764 = vrot.slane %v762, 7
    %v765 = vrot.slane %v763, 7
    %v766 = vsel %vm109, %v764, %v765
    %v767 = vsel %vm109, %v765, %v764
    %v768 = vmul.f32 %v767, %v80
    %v769 = vmul.f32 %v766, %v81
    %770 = vrot.lane.b32.xlu0 %v768, 127
    %v771 = vpop.permute.xlu0 %770
    %772 = vrot.lane.b32.xlu0 %v769, 127
    %v773 = vpop.permute.xlu0 %772
    %v774 = vmul.f32 %v771, %v72
    %v775 = vmul.f32 %v773, %v72
    %v776 = vadd.f32 %v746, %v774
    %v777 = vadd.f32 %v747, %v775
    %s778 = sld [smem:[#allocation2 + $0x39]]
    %v779 = vstv %s778
    %v780 = vmul.f32 %v142, %v779
    %v781 = vmul.f32 %v143, %v779
    %s782 = sld [smem:[#allocation2 + $0x42]]
    %v783 = vstv %s782
    %v784 = vmul.f32 %v189, %v783
    %v785 = vmul.f32 %v190, %v783
    %v786 = vadd.f32 %v780, %v784
    %v787 = vadd.f32 %v781, %v785
    %s788 = sld [smem:[#allocation2 + $0x4b]]
    %v789 = vstv %s788
    %v790 = vmul.f32 %v157, %v789
    %v791 = vmul.f32 %v158, %v789
    %v792 = vadd.f32 %v786, %v790
    %v793 = vadd.f32 %v787, %v791
    %794 = vrot.lane.b32.xlu0 %v792, 1
    %v795 = vpop.permute.xlu0 %794
    %796 = vrot.lane.b32.xlu0 %v793, 1
    %v797 = vpop.permute.xlu0 %796
    %v798 = vmul.f32 %v795, %v69
    %v799 = vmul.f32 %v797, %v69
    %v800 = vadd.f32 %v776, %v798
    %v801 = vadd.f32 %v777, %v799
    %s802 = sld [smem:[#allocation2 + $0x3a]]
    %v803 = vstv %s802
    %v804 = vmul.f32 %v142, %v803
    %v805 = vmul.f32 %v143, %v803
    %s806 = sld [smem:[#allocation2 + $0x43]]
    %v807 = vstv %s806
    %v808 = vmul.f32 %v189, %v807
    %v809 = vmul.f32 %v190, %v807
    %v810 = vadd.f32 %v804, %v808
    %v811 = vadd.f32 %v805, %v809
    %s812 = sld [smem:[#allocation2 + $0x4c]]
    %v813 = vstv %s812
    %v814 = vmul.f32 %v157, %v813
    %v815 = vmul.f32 %v158, %v813
    %v816 = vadd.f32 %v810, %v814
    %v817 = vadd.f32 %v811, %v815
    %v818 = vadd.f32 %v800, %v816
    %v819 = vadd.f32 %v801, %v817
    %s820 = sld [smem:[#allocation2 + $0x3b]]
    %v821 = vstv %s820
    %v822 = vmul.f32 %v142, %v821
    %v823 = vmul.f32 %v143, %v821
    %s824 = sld [smem:[#allocation2 + $0x44]]
    %v825 = vstv %s824
    %v826 = vmul.f32 %v189, %v825
    %v827 = vmul.f32 %v190, %v825
    %v828 = vadd.f32 %v822, %v826
    %v829 = vadd.f32 %v823, %v827
    %s830 = sld [smem:[#allocation2 + $0x4d]]
    %v831 = vstv %s830
    %v832 = vmul.f32 %v157, %v831
    %v833 = vmul.f32 %v158, %v831
    %v834 = vadd.f32 %v828, %v832
    %v835 = vadd.f32 %v829, %v833
    %836 = vrot.lane.b32.xlu0 %v834, 127
    %v837 = vpop.permute.xlu0 %836
    %838 = vrot.lane.b32.xlu0 %v835, 127
    %v839 = vpop.permute.xlu0 %838
    %v840 = vmul.f32 %v837, %v72
    %v841 = vmul.f32 %v839, %v72
    %v842 = vadd.f32 %v818, %v840
    %v843 = vadd.f32 %v819, %v841
    %s844 = sld [smem:[#allocation2 + $0x3c]]
    %v845 = vstv %s844
    %v846 = vmul.f32 %v142, %v845
    %v847 = vmul.f32 %v143, %v845
    %s848 = sld [smem:[#allocation2 + $0x45]]
    %v849 = vstv %s848
    %v850 = vmul.f32 %v189, %v849
    %v851 = vmul.f32 %v190, %v849
    %v852 = vadd.f32 %v846, %v850
    %v853 = vadd.f32 %v847, %v851
    %s854 = sld [smem:[#allocation2 + $0x4e]]
    %v855 = vstv %s854
    %v856 = vmul.f32 %v157, %v855
    %v857 = vmul.f32 %v158, %v855
    %v858 = vadd.f32 %v852, %v856
    %v859 = vadd.f32 %v853, %v857
    %v860 = vrot.slane %v858, 1
    %v861 = vrot.slane %v859, 1
    %v862 = vsel %vm150, %v860, %v861
    %v863 = vsel %vm150, %v861, %v860
    %v864 = vmul.f32 %v862, %v86
    %v865 = vmul.f32 %v863, %v87
    %866 = vrot.lane.b32.xlu0 %v864, 1
    %v867 = vpop.permute.xlu0 %866
    %868 = vrot.lane.b32.xlu0 %v865, 1
    %v869 = vpop.permute.xlu0 %868
    %v870 = vmul.f32 %v867, %v69
    %v871 = vmul.f32 %v869, %v69
    %v872 = vadd.f32 %v842, %v870
    %v873 = vadd.f32 %v843, %v871
    %s874 = sld [smem:[#allocation2 + $0x3d]]
    %v875 = vstv %s874
    %v876 = vmul.f32 %v142, %v875
    %v877 = vmul.f32 %v143, %v875
    %s878 = sld [smem:[#allocation2 + $0x46]]
    %v879 = vstv %s878
    %v880 = vmul.f32 %v189, %v879
    %v881 = vmul.f32 %v190, %v879
    %v882 = vadd.f32 %v876, %v880
    %v883 = vadd.f32 %v877, %v881
    %s884 = sld [smem:[#allocation2 + $0x4f]]
    %v885 = vstv %s884
    %v886 = vmul.f32 %v157, %v885
    %v887 = vmul.f32 %v158, %v885
    %v888 = vadd.f32 %v882, %v886
    %v889 = vadd.f32 %v883, %v887
    %v890 = vrot.slane %v888, 1
    %v891 = vrot.slane %v889, 1
    %v892 = vsel %vm150, %v890, %v891
    %v893 = vsel %vm150, %v891, %v890
    %v894 = vmul.f32 %v892, %v86
    %v895 = vmul.f32 %v893, %v87
    %v896 = vadd.f32 %v872, %v894
    %v897 = vadd.f32 %v873, %v895
    %s898 = sld [smem:[#allocation2 + $0x3e]]
    %v899 = vstv %s898
    %v900 = vmul.f32 %v142, %v899
    %v901 = vmul.f32 %v143, %v899
    %s902 = sld [smem:[#allocation2 + $0x47]]
    %v903 = vstv %s902
    %v904 = vmul.f32 %v189, %v903
    %v905 = vmul.f32 %v190, %v903
    %v906 = vadd.f32 %v900, %v904
    %v907 = vadd.f32 %v901, %v905
    %s908 = sld [smem:[#allocation2 + $0x50]]
    %v909 = vstv %s908
    %v910 = vmul.f32 %v157, %v909
    %v911 = vmul.f32 %v158, %v909
    %v912 = vadd.f32 %v906, %v910
    %v913 = vadd.f32 %v907, %v911
    %v914 = vrot.slane %v912, 1
    %v915 = vrot.slane %v913, 1
    %v916 = vsel %vm150, %v914, %v915
    %v917 = vsel %vm150, %v915, %v914
    %v918 = vmul.f32 %v916, %v86
    %v919 = vmul.f32 %v917, %v87
    %920 = vrot.lane.b32.xlu0 %v918, 127
    %v921 = vpop.permute.xlu0 %920
    %922 = vrot.lane.b32.xlu0 %v919, 127
    %v923 = vpop.permute.xlu0 %922
    %v924 = vmul.f32 %v921, %v72
    %v925 = vmul.f32 %v923, %v72
    %v926 = vadd.f32 %v896, %v924
    %v927 = vadd.f32 %v897, %v925
    %s928 = sld [smem:[#allocation4 + $0x2]]
    %v929 = vstv %s928
    %v930 = vmul.f32 %v926, %v929
    %v931 = vmul.f32 %v927, %v929
    %s932 = sld [smem:[#allocation6 + $0x2]]
    %v933 = vstv %s932
    %v934 = vadd.f32 %v930, %v933
    %v935 = vadd.f32 %v931, %v933
    %v936 = vmax.f32 %v934, -1.0
    %v937 = vmax.f32 %v935, -1.0
    %v938 = vmin.f32 %v936, 1.0
    %v939 = vmin.f32 %v937, 1.0
    %940 = vrot.lane.b32.xlu0 %v938, 96
    %v941 = vpop.permute.xlu0 %940
    %942 = vrot.lane.b32.xlu0 %v939, 96
    %v943 = vpop.permute.xlu0 %942
    %v944 = vsub.f32 %v938, %v941
    %v945 = vsub.f32 %v939, %v943
    %s946 = scalar_lea.vmem %s4, 32
    %947 = vst [vmem:[%s946] sm:$0xff] %v944
    %948 = vst [vmem:[%s946 + $0x8] sm:$0xff] %v945
    // Predicated region
    $region30: #{run.1} parent=1 // pred_check
      _
    $region31: #{run.1} parent=1 // pred_check_branch
      %950 = sbr.rel (0) target = $region33
    $region32: #{run.1} parent=1 // pred_region
      _
    $region33: #{run.1} parent=1 // pred_fallthru
      _
    // Predicated region
    $region34: #{run.1} parent=1 // pred_check
      _
    $region35: #{run.1} parent=1 // pred_check_branch
      %952 = sbr.rel (0) target = $region37
    $region36: #{run.1} parent=1 // pred_region
      _
    $region37: #{run.1} parent=1 // pred_fallthru
      _
    %953 = vsyncpa [#allocation3], 1
    %954 = vsyncpa [#allocation5], 1

</llo_original>
